<compile_context>
chip_gen: v7x
topology: tpu7x:2x2x1
jax: 0.10.0
libtpu: 0.0.40
codegen_flags: <defaults>
</compile_context>

<pallas_src>
import jax
import jax.numpy as jnp
from jax.experimental import pallas as pl
from jax.experimental.pallas import tpu as pltpu


def _linear_add_relu_kernel(x_ref, w_ref, b_ref, other_ref, o_ref):
    # MXU matmul (full-N, weight-stationary) with f32 accumulation, then fused
    # bias + add + relu on the VPU (free filler under the MXU/DMA critical path).
    acc = jnp.dot(
        x_ref[...],
        w_ref[...],
        preferred_element_type=jnp.float32,
        precision=jax.lax.Precision.HIGHEST,
    )
    v = acc + b_ref[...] + other_ref[...]
    o_ref[...] = jnp.maximum(v, 0.0).astype(o_ref.dtype)


def linear_add_relu(x, w_t, b2d, other, *, tm=512, split_for_megacore=True,
                    alias_other=False):
    """x: (M, K), w_t: (K, N), b2d: (1, N), other: (M, N) -> (M, N)."""
    M, K = x.shape
    N = w_t.shape[1]

    # Single M tile when the batch is small; cap at tm (default 512) otherwise.
    tm = min(tm, M)
    # v7x has 2 TensorCores: keep >= 2 "parallel" grid steps when M allows it so
    # the second core isn't idle (weight duplicated per core is only ~K*N*4 B).
    if split_for_megacore and pl.cdiv(M, tm) < 2 and M >= 16 and (M // 2) % 8 == 0:
        tm = M // 2

    grid = (pl.cdiv(M, tm),)  # 1-D grid over M only; weight stays resident.

    cost = pl.CostEstimate(
        flops=2 * M * K * N,
        bytes_accessed=4 * (M * K + K * N + 2 * M * N + N),
        transcendentals=0,
    )

    kwargs = {}
    if alias_other:
        # `other` (input index 3) and the output share shape/dtype; reuse its
        # HBM buffer when the caller no longer needs `other`.
        kwargs["input_output_aliases"] = {3: 0}

    return pl.pallas_call(
        _linear_add_relu_kernel,
        out_shape=jax.ShapeDtypeStruct((M, N), x.dtype),
        grid=grid,
        in_specs=[
            pl.BlockSpec((tm, K), lambda i: (i, 0)),   # x: per M-tile, full K
            pl.BlockSpec((K, N), lambda i: (0, 0)),    # w: whole weight, resident
            pl.BlockSpec((1, N), lambda i: (0, 0)),    # bias: whole row, resident
            pl.BlockSpec((tm, N), lambda i: (i, 0)),   # other: per M-tile
        ],
        out_specs=pl.BlockSpec((tm, N), lambda i: (i, 0)),
        compiler_params=pltpu.CompilerParams(
            dimension_semantics=("parallel",),  # M tiles are independent
        ),
        cost_estimate=cost,
        **kwargs,
    )(x, w_t, b2d, other)


if __name__ == "__main__":
    key = jax.random.PRNGKey(0)
    k_x, k_w, k_b, k_o = jax.random.split(key, 4)

    M, K, N = 16, 512, 256  # matches Linear(512, 256) with batch 16

    x = jax.random.normal(k_x, (M, K), dtype=jnp.float32)
    # PyTorch Linear weight is (out, in) = (N, K); materialize the (K, N) layout once.
    w = jax.random.normal(k_w, (N, K), dtype=jnp.float32) * (1.0 / jnp.sqrt(K))
    w_t = jnp.asarray(w.T)                 # (K, N), done once (not per forward)
    b = jax.random.normal(k_b, (N,), dtype=jnp.float32) * 0.01
    b2d = b.reshape(1, N)                  # hoisted out of the traced wrapper
    other = jax.random.normal(k_o, (M, N), dtype=jnp.float32)

    out = linear_add_relu(x, w_t, b2d, other)
    out = jax.block_until_ready(out)

    # sanity check against plain JAX reference
    ref = jnp.maximum(x @ w.T + b + other, 0.0)
    assert out.shape == (M, N)
    assert jnp.allclose(out, ref, atol=1e-4, rtol=1e-4), "mismatch vs reference"

    print("KERNEL_OK")
</pallas_src>

<mosaic_0001>
module attributes {stable_mosaic.version = 11 : i64} {
  func.func @_linear_add_relu_kernel(%arg0: i32, %arg1: memref<8x512xf32, #tpu.memory_space<vmem>>, %arg2: memref<512x256xf32, #tpu.memory_space<vmem>>, %arg3: memref<1x256xf32, #tpu.memory_space<vmem>>, %arg4: memref<8x256xf32, #tpu.memory_space<vmem>>, %arg5: memref<8x256xf32, #tpu.memory_space<vmem>>) attributes {dimension_semantics = [#tpu.dimension_semantics<parallel>], iteration_bounds = array<i64: 2>, scalar_prefetch = 0 : i64, scratch_operands = 0 : i64, tpu.core_type = #tpu.core_type<tc>, window_params = [{transform_indices = @transform_0, window_bounds = array<i64: 8, 512>}, {pipeline_mode = #tpu.pipeline_mode<synchronous>, transform_indices = @transform_1, window_bounds = array<i64: 512, 256>}, {pipeline_mode = #tpu.pipeline_mode<synchronous>, transform_indices = @transform_2, window_bounds = array<i64: 1, 256>}, {transform_indices = @transform_3, window_bounds = array<i64: 8, 256>}, {transform_indices = @transform_4, window_bounds = array<i64: 8, 256>}]} {
    %c0 = arith.constant 0 : index
    %c0_0 = arith.constant 0 : index
    %0 = vector.load %arg1[%c0, %c0_0] : memref<8x512xf32, #tpu.memory_space<vmem>>, vector<8x512xf32>
    %c0_1 = arith.constant 0 : index
    %c0_2 = arith.constant 0 : index
    %1 = vector.load %arg2[%c0_1, %c0_2] : memref<512x256xf32, #tpu.memory_space<vmem>>, vector<512x256xf32>
    %cst = arith.constant dense<0.000000e+00> : vector<8x256xf32>
    %2 = tpu.matmul %0, %1, %cst {dimension_numbers = #tpu.dot_dimension_numbers<[1], [0], [0], [1], [0, 0, 1, 1], [], []>, precision = #tpu.contract_precision<fp32>} : vector<8x512xf32>, vector<512x256xf32>, vector<8x256xf32> -> vector<8x256xf32>
    %c0_3 = arith.constant 0 : index
    %c0_4 = arith.constant 0 : index
    %3 = vector.load %arg3[%c0_3, %c0_4] : memref<1x256xf32, #tpu.memory_space<vmem>>, vector<1x256xf32>
    %4 = vector.broadcast %3 : vector<1x256xf32> to vector<8x256xf32>
    %5 = arith.addf %2, %4 : vector<8x256xf32>
    %c0_5 = arith.constant 0 : index
    %c0_6 = arith.constant 0 : index
    %6 = vector.load %arg4[%c0_5, %c0_6] : memref<8x256xf32, #tpu.memory_space<vmem>>, vector<8x256xf32>
    %7 = arith.addf %5, %6 : vector<8x256xf32>
    %cst_7 = arith.constant 0.000000e+00 : f32
    %8 = vector.broadcast %cst_7 : f32 to vector<8x256xf32>
    %9 = arith.maximumf %7, %8 : vector<8x256xf32>
    %c0_8 = arith.constant 0 : index
    %c0_9 = arith.constant 0 : index
    %10 = vector.load %arg5[%c0_8, %c0_9] : memref<8x256xf32, #tpu.memory_space<vmem>>, vector<8x256xf32>
    tpu.vector_store %arg5[%c0_8, %c0_9], %9 {strides = array<i32>} : memref<8x256xf32, #tpu.memory_space<vmem>>, vector<8x256xf32>,
    return
  }
  func.func @transform_0(%arg0: i32) -> (i32, i32) {
    %c0_i32 = arith.constant 0 : i32
    %c0_i32_0 = arith.constant 0 : i32
    return %arg0, %c0_i32 : i32, i32
  }
  func.func @transform_1(%arg0: i32) -> (i32, i32) {
    %c0_i32 = arith.constant 0 : i32
    %c0_i32_0 = arith.constant 0 : i32
    %c0_i32_1 = arith.constant 0 : i32
    return %c0_i32, %c0_i32_0 : i32, i32
  }
  func.func @transform_2(%arg0: i32) -> (i32, i32) {
    %c0_i32 = arith.constant 0 : i32
    %c0_i32_0 = arith.constant 0 : i32
    %c0_i32_1 = arith.constant 0 : i32
    return %c0_i32, %c0_i32_0 : i32, i32
  }
  func.func @transform_3(%arg0: i32) -> (i32, i32) {
    %c0_i32 = arith.constant 0 : i32
    %c0_i32_0 = arith.constant 0 : i32
    return %arg0, %c0_i32 : i32, i32
  }
  func.func @transform_4(%arg0: i32) -> (i32, i32) {
    %c0_i32 = arith.constant 0 : i32
    %c0_i32_0 = arith.constant 0 : i32
    return %arg0, %c0_i32 : i32, i32
  }
}

</mosaic_0001>

<llo_original>
// kernel: tpu_custom_call.1
$region0: #{tpu_custom_call.1}
  #allocation0 [shape = 'u32[]', space=smem, size = 0x4, offset = 0x4, fixed_abs, tag = 'smem constant byte address 0x4 - core index']
  #allocation1 [shape = 'u32[144,128]{1,0:T(1,128)}', space=vmem, size = 0x12000, scoped, tag = 'internal scratch']
  %s0 = inlined_call_operand.hbm [shape: f32[16,512], index: 0, kind: input, shape index: {}]
  %s1 = inlined_call_operand.hbm [shape: f32[512,256], index: 1, kind: input, shape index: {}]
  %s2 = inlined_call_operand.vmem [shape: f32[1,256], index: 2, kind: input, shape index: {}]
  %s3 = inlined_call_operand.hbm [shape: f32[16,256], index: 3, kind: input, shape index: {}]
  %s4 = inlined_call_operand.hbm [shape: f32[16,256], index: 4, kind: output, shape index: {}]
  %s5 = sld [smem:[#allocation0]]
  $region61: #{tpu_custom_call.1} parent=0
    _
  %s7 = ssub.s32 1, %s5
  %s8 = scalar_select 0, %s7, %s5
  $region1: #{tpu_custom_call.1} parent=0
    #allocation2 [shape = 'u8[32768]{0}', space=vmem, size = 0x8000, scoped, tag = 'input window, operand 0']
    #allocation3 [shape = 's32[2]{0}', space=sflag, size = 0x8, scoped, tag = 'scoped memory for tpu_custom_call.1']
    #allocation4 [shape = 's32[2]{0}', space=sflag, size = 0x8, scoped, tag = 'scoped memory for tpu_custom_call.1']
    #allocation5 [shape = 'u8[524288]{0}', space=vmem, size = 0x80000, scoped, tag = 'input window, operand 1, single buffered']
    #allocation6 [shape = 's32[1]{0}', space=sflag, size = 0x4, scoped, tag = 'scoped memory for tpu_custom_call.1']
    #allocation7 [shape = 'u8[16384]{0}', space=vmem, size = 0x4000, scoped, tag = 'input window, operand 3']
    #allocation8 [shape = 'u8[16384]{0}', space=vmem, size = 0x4000, scoped, tag = 'output window, operand 0']
    %9 = vsyncpa [#allocation3], 0
    %s10 = scalar_lea.sflag [#allocation3], 1
    %11 = vsyncpa %s10, 0
    %12 = vsyncpa [#allocation6], 0
    %13 = vsyncpa [#allocation4], 0
    %s14 = scalar_lea.sflag [#allocation4], 1
    %15 = vsyncpa %s14, 0
    loop: start=0, step=1, limit=4
    $region2: #{tpu_custom_call.1} parent=1 // loop_pre_header
      _
    $region3: #{tpu_custom_call.1} parent=1 // loop_header
      %s17 = sphi 0, %s21
      %p18 = scmp.ge.s32.totalorder %s17, 4
      %s27 = sphi 0, %s29
      %s30 = sphi 0, %s27
      %s31 = sphi 0, %s30
      %s47 = sphi 0, %s31
      %s51 = sphi 0, %s51
      %s53 = sphi 0, %s51
      %s54 = sphi 0, %s53
      %s68 = sphi 0, %s54
      %s72 = sphi 0, %s72
      %s74 = sphi 0, %s72
      %s75 = sphi 0, %s74
      %s89 = sphi 0, %s75
      %s95 = sphi 0, %s97
      %s98 = sphi 0, %s95
      %s99 = sphi 0, %s98
      %s115 = sphi 0, %s99
      %s121 = sphi 0, %s123
      %s124 = sphi 0, %s121
      %s125 = sphi 0, %s124
      %s141 = sphi 0, %s125
    $region4: #{tpu_custom_call.1} parent=1 // loop_header_branch
      %20 = sbr.rel (%p18) target = $region8
    $region5: #{tpu_custom_call.1} parent=1 // loop_body
      %s22 = ssub.s32 %s17, 1
      %s23 = ssub.s32 %s17, 2
      %s24 = sadd.s32 %s17, 1
      %s25 = ssub.s32 %s17, %s24
      %p26 = scmp.eq.s32.totalorder %s25, 0
      %s28 = sadd.s32 %s27, 1
      %s29 = scalar_select %p26, %s27, %s28
      %p32 = pneg %p26
      %p33 = scmp.eq.s32.totalorder %s17, 1
      %p34 = por %p32, %p33
      %p35 = scmp.ne.s32.totalorder %s27, %s30
      %p36 = scmp.eq.s32.totalorder %s17, 0
      %p37 = por %p35, %p36
      %p38 = scmp.ne.s32.totalorder %s27, %s30
      %p39 = scmp.eq.s32.totalorder %s22, 1
      %p40 = por %p38, %p39
      %p41 = scmp.ne.s32.totalorder %s30, %s31
      %p42 = scmp.eq.s32.totalorder %s22, 0
      %p43 = por %p41, %p42
      %p44 = scmp.ne.s32.totalorder %s30, %s31
      %p45 = scmp.eq.s32.totalorder %s23, 1
      %p46 = por %p44, %p45
      %p48 = scmp.ne.s32.totalorder %s31, %s47
      %p49 = scmp.eq.s32.totalorder %s23, 0
      %p50 = por %p48, %p49
      %s52 = sadd.s32 %s51, 1
      %p55 = scmp.eq.s32.totalorder %s17, 1
      %p56 = scmp.ne.s32.totalorder %s51, %s53
      %p57 = scmp.eq.s32.totalorder %s17, 0
      %p58 = por %p56, %p57
      %p59 = scmp.ne.s32.totalorder %s51, %s53
      %p60 = scmp.eq.s32.totalorder %s22, 1
      %p61 = por %p59, %p60
      %p62 = scmp.ne.s32.totalorder %s53, %s54
      %p63 = scmp.eq.s32.totalorder %s22, 0
      %p64 = por %p62, %p63
      %p65 = scmp.ne.s32.totalorder %s53, %s54
      %p66 = scmp.eq.s32.totalorder %s23, 1
      %p67 = por %p65, %p66
      %p69 = scmp.ne.s32.totalorder %s54, %s68
      %p70 = scmp.eq.s32.totalorder %s23, 0
      %p71 = por %p69, %p70
      %s73 = sadd.s32 %s72, 1
      %p76 = scmp.eq.s32.totalorder %s17, 1
      %p77 = scmp.ne.s32.totalorder %s72, %s74
      %p78 = scmp.eq.s32.totalorder %s17, 0
      %p79 = por %p77, %p78
      %p80 = scmp.ne.s32.totalorder %s72, %s74
      %p81 = scmp.eq.s32.totalorder %s22, 1
      %p82 = por %p80, %p81
      %p83 = scmp.ne.s32.totalorder %s74, %s75
      %p84 = scmp.eq.s32.totalorder %s22, 0
      %p85 = por %p83, %p84
      %p86 = scmp.ne.s32.totalorder %s74, %s75
      %p87 = scmp.eq.s32.totalorder %s23, 1
      %p88 = por %p86, %p87
      %p90 = scmp.ne.s32.totalorder %s75, %s89
      %p91 = scmp.eq.s32.totalorder %s23, 0
      %p92 = por %p90, %p91
      %s93 = ssub.s32 %s17, %s24
      %p94 = scmp.eq.s32.totalorder %s93, 0
      %s96 = sadd.s32 %s95, 1
      %s97 = scalar_select %p94, %s95, %s96
      %p100 = pneg %p94
      %p101 = scmp.eq.s32.totalorder %s17, 1
      %p102 = por %p100, %p101
      %p103 = scmp.ne.s32.totalorder %s95, %s98
      %p104 = scmp.eq.s32.totalorder %s17, 0
      %p105 = por %p103, %p104
      %p106 = scmp.ne.s32.totalorder %s95, %s98
      %p107 = scmp.eq.s32.totalorder %s22, 1
      %p108 = por %p106, %p107
      %p109 = scmp.ne.s32.totalorder %s98, %s99
      %p110 = scmp.eq.s32.totalorder %s22, 0
      %p111 = por %p109, %p110
      %p112 = scmp.ne.s32.totalorder %s98, %s99
      %p113 = scmp.eq.s32.totalorder %s23, 1
      %p114 = por %p112, %p113
      %p116 = scmp.ne.s32.totalorder %s99, %s115
      %p117 = scmp.eq.s32.totalorder %s23, 0
      %p118 = por %p116, %p117
      %s119 = ssub.s32 %s17, %s24
      %p120 = scmp.eq.s32.totalorder %s119, 0
      %s122 = sadd.s32 %s121, 1
      %s123 = scalar_select %p120, %s121, %s122
      %p126 = pneg %p120
      %p127 = scmp.eq.s32.totalorder %s17, 1
      %p128 = por %p126, %p127
      %p129 = scmp.ne.s32.totalorder %s121, %s124
      %p130 = scmp.eq.s32.totalorder %s17, 0
      %p131 = por %p129, %p130
      %p132 = scmp.ne.s32.totalorder %s121, %s124
      %p133 = scmp.eq.s32.totalorder %s22, 1
      %p134 = por %p132, %p133
      %p135 = scmp.ne.s32.totalorder %s124, %s125
      %p136 = scmp.eq.s32.totalorder %s22, 0
      %p137 = por %p135, %p136
      %p138 = scmp.ne.s32.totalorder %s124, %s125
      %p139 = scmp.eq.s32.totalorder %s23, 1
      %p140 = por %p138, %p139
      %p142 = scmp.ne.s32.totalorder %s125, %s141
      %p143 = scmp.eq.s32.totalorder %s23, 0
      %p144 = por %p142, %p143
      %p145 = scmp.le.s32.totalorder 1, %s17
      %p146 = scmp.lt.s32.totalorder %s17, 3
      %p147 = pnand %p145, %p146
      %p148 = pneg %p147
      // Predicated region
      $region9: #{tpu_custom_call.1} parent=5 // pred_check
        _
      $region10: #{tpu_custom_call.1} parent=5 // pred_check_branch
        %150 = sbr.rel (%p147) target = $region12
      $region11: #{tpu_custom_call.1} parent=5 // pred_region
        %s151 = ssub.s32 %s17, 1
        // Predicated region
        $region13: #{tpu_custom_call.1} parent=11 // pred_check
          %p152 = pneg %p64
        $region14: #{tpu_custom_call.1} parent=11 // pred_check_branch
          %154 = sbr.rel (%p152) target = $region16
        $region15: #{tpu_custom_call.1} parent=11 // pred_region
          %s156 = ssub.s32 16384, 16384
          %157 = vsyncadd [#allocation6], %s156
          %s158 = sshll.u32 [#allocation5], 4
          %s159 = int_to_ptr.vmem [resolvable:$true] %s158
          %164 = dma.hbm_to_vmem [thread:$0]  %s1, 16384, %s159, [#allocation6], 256, 256, 16
        $region16: #{tpu_custom_call.1} parent=11 // pred_fallthru
          _
        // Predicated region
        $region17: #{tpu_custom_call.1} parent=11 // pred_check
          %p165 = pneg %p85
        $region18: #{tpu_custom_call.1} parent=11 // pred_check_branch
          %167 = sbr.rel (%p165) target = $region20
        $region19: #{tpu_custom_call.1} parent=11 // pred_region
          _
        $region20: #{tpu_custom_call.1} parent=11 // pred_fallthru
          _
      $region12: #{tpu_custom_call.1} parent=5 // pred_fallthru
        _
      %p168 = scmp.lt.s32.totalorder %s17, 2
      // Predicated region
      $region21: #{tpu_custom_call.1} parent=5 // pred_check
        %p169 = pneg %p168
      $region22: #{tpu_custom_call.1} parent=5 // pred_check_branch
        %171 = sbr.rel (%p169) target = $region24
      $region23: #{tpu_custom_call.1} parent=5 // pred_region
        // Predicated region
        $region25: #{tpu_custom_call.1} parent=23 // pred_check
          %p172 = pneg %p37
        $region26: #{tpu_custom_call.1} parent=23 // pred_check_branch
          %174 = sbr.rel (%p172) target = $region28
        $region27: #{tpu_custom_call.1} parent=23 // pred_region
          %s175 = sand.u32 %s17, 1
          %s176 = scalar_lea.sflag [#allocation3], %s175
          %s177 = sand.u32 %s27, 1
          %s178 = smul.addr %s177, 32
          %s179 = scalar_lea.vmem [#allocation2], %s178
          %s181 = ssub.s32 512, 512
          %182 = vsyncadd %s176, %s181
          %s183 = smul.addr %s17, 4
          %s184 = smul.addr %s183, 128
          %s185 = scalar_lea.hbm %s0, %s184
          %s187 = sshll.u32 %s179, 4
          %s188 = int_to_ptr.vmem [resolvable:$true] %s187
          %190 = dma.hbm_to_vmem [thread:$0]  %s185, 512, %s188, %s176
        $region28: #{tpu_custom_call.1} parent=23 // pred_fallthru
          _
        // Predicated region
        $region29: #{tpu_custom_call.1} parent=23 // pred_check
          %p191 = pneg %p105
        $region30: #{tpu_custom_call.1} parent=23 // pred_check_branch
          %193 = sbr.rel (%p191) target = $region32
        $region31: #{tpu_custom_call.1} parent=23 // pred_region
          %s194 = sand.u32 %s17, 1
          %s195 = scalar_lea.sflag [#allocation3], %s194
          %s196 = sand.u32 %s95, 1
          %s197 = smul.addr %s196, 16
          %s198 = scalar_lea.vmem [#allocation7], %s197
          %s200 = ssub.s32 256, 256
          %201 = vsyncadd %s195, %s200
          %s202 = smul.addr %s17, 2
          %s203 = smul.addr %s202, 128
          %s204 = scalar_lea.hbm %s3, %s203
          %s206 = sshll.u32 %s198, 4
          %s207 = int_to_ptr.vmem [resolvable:$true] %s206
          %209 = dma.hbm_to_vmem [thread:$0]  %s204, 256, %s207, %s195
        $region32: #{tpu_custom_call.1} parent=23 // pred_fallthru
          _
      $region24: #{tpu_custom_call.1} parent=5 // pred_fallthru
        _
      %p210 = scmp.le.s32.totalorder 1, %s17
      %p211 = scmp.lt.s32.totalorder %s17, 3
      %p212 = pnand %p210, %p211
      %p213 = pneg %p212
      // Predicated region
      $region33: #{tpu_custom_call.1} parent=5 // pred_check
        _
      $region34: #{tpu_custom_call.1} parent=5 // pred_check_branch
        %215 = sbr.rel (%p212) target = $region36
      $region35: #{tpu_custom_call.1} parent=5 // pred_region
        %s216 = ssub.s32 %s17, 1
        %s217 = sand.u32 %s22, 1
        %s218 = scalar_lea.sflag [#allocation3], %s217
        %s219 = sand.u32 %s30, 1
        %s220 = smul.addr %s219, 32
        %s221 = scalar_lea.vmem [#allocation2], %s220
        // Predicated region
        $region37: #{tpu_custom_call.1} parent=35 // pred_check
          %p222 = pneg %p43
        $region38: #{tpu_custom_call.1} parent=35 // pred_check_branch
          %224 = sbr.rel (%p222) target = $region40
        $region39: #{tpu_custom_call.1} parent=35 // pred_region
          %225 = dma.done %s218, 512
        $region40: #{tpu_custom_call.1} parent=35 // pred_fallthru
          _
        // Predicated region
        $region41: #{tpu_custom_call.1} parent=35 // pred_check
          %p226 = pneg %p64
        $region42: #{tpu_custom_call.1} parent=35 // pred_check_branch
          %228 = sbr.rel (%p226) target = $region44
        $region43: #{tpu_custom_call.1} parent=35 // pred_region
          %229 = dma.done [#allocation6], 16384
        $region44: #{tpu_custom_call.1} parent=35 // pred_fallthru
          _
        %s230 = sand.u32 %s22, 1
        %s231 = scalar_lea.sflag [#allocation3], %s230
        %s232 = sand.u32 %s98, 1
        %s233 = smul.addr %s232, 16
        %s234 = scalar_lea.vmem [#allocation7], %s233
        // Predicated region
        $region45: #{tpu_custom_call.1} parent=35 // pred_check
          %p235 = pneg %p111
        $region46: #{tpu_custom_call.1} parent=35 // pred_check_branch
          %237 = sbr.rel (%p235) target = $region48
        $region47: #{tpu_custom_call.1} parent=35 // pred_region
          %238 = dma.done %s231, 256
        $region48: #{tpu_custom_call.1} parent=35 // pred_fallthru
          _
        %s239 = sand.u32 %s22, 1
        %s240 = scalar_lea.sflag [#allocation3], %s239
        %s241 = sand.u32 %s30, 1
        %s242 = smul.addr %s241, 32
        %s243 = scalar_lea.vmem [#allocation2], %s242
        %p244 = pneg %p43
        %p245 = pneg %p40
        %p246 = pneg %p64
        %p247 = pneg %p61
        %p248 = pneg %p85
        %p249 = pneg %p82
        %s250 = sand.u32 %s22, 1
        %s251 = scalar_lea.sflag [#allocation3], %s250
        %s252 = sand.u32 %s98, 1
        %s253 = smul.addr %s252, 16
        %s254 = scalar_lea.vmem [#allocation7], %s253
        %p255 = pneg %p111
        %p256 = pneg %p108
        %p257 = pneg %p137
        %p258 = pneg %p134
        %s259 = sand.u32 %s124, 1
        %s260 = scalar_lea.sflag [#allocation4], %s259
        %s261 = sand.u32 %s124, 1
        %s262 = smul.addr %s261, 16
        %s263 = scalar_lea.vmem [#allocation8], %s262
        %v264 = vld [vmem:[%s221] sm:$0xff]
        %v265 = vld [vmem:[%s221 + $0x8] sm:$0xff]
        %v266 = vld [vmem:[%s221 + $0x10] sm:$0xff]
        %v267 = vld [vmem:[%s221 + $0x18] sm:$0xff]
        %v268 = vld [vmem:[#allocation5] sm:$0xff]
        %v269 = vld [vmem:[#allocation5 + $0x8] sm:$0xff]
        %v270 = vld [vmem:[#allocation5 + $0x10] sm:$0xff]
        %v271 = vld [vmem:[#allocation5 + $0x18] sm:$0xff]
        %v272 = vld [vmem:[#allocation5 + $0x20] sm:$0xff]
        %v273 = vld [vmem:[#allocation5 + $0x28] sm:$0xff]
        %v274 = vld [vmem:[#allocation5 + $0x30] sm:$0xff]
        %v275 = vld [vmem:[#allocation5 + $0x38] sm:$0xff]
        %v276 = vld [vmem:[#allocation5 + $0x40] sm:$0xff]
        %v277 = vld [vmem:[#allocation5 + $0x48] sm:$0xff]
        %v278 = vld [vmem:[#allocation5 + $0x50] sm:$0xff]
        %v279 = vld [vmem:[#allocation5 + $0x58] sm:$0xff]
        %v280 = vld [vmem:[#allocation5 + $0x60] sm:$0xff]
        %v281 = vld [vmem:[#allocation5 + $0x68] sm:$0xff]
        %v282 = vld [vmem:[#allocation5 + $0x70] sm:$0xff]
        %v283 = vld [vmem:[#allocation5 + $0x78] sm:$0xff]
        %v284 = vld [vmem:[#allocation5 + $0x80] sm:$0xff]
        %v285 = vld [vmem:[#allocation5 + $0x88] sm:$0xff]
        %v286 = vld [vmem:[#allocation5 + $0x90] sm:$0xff]
        %v287 = vld [vmem:[#allocation5 + $0x98] sm:$0xff]
        %v288 = vld [vmem:[#allocation5 + $0xa0] sm:$0xff]
        %v289 = vld [vmem:[#allocation5 + $0xa8] sm:$0xff]
        %v290 = vld [vmem:[#allocation5 + $0xb0] sm:$0xff]
        %v291 = vld [vmem:[#allocation5 + $0xb8] sm:$0xff]
        %v292 = vld [vmem:[#allocation5 + $0xc0] sm:$0xff]
        %v293 = vld [vmem:[#allocation5 + $0xc8] sm:$0xff]
        %v294 = vld [vmem:[#allocation5 + $0xd0] sm:$0xff]
        %v295 = vld [vmem:[#allocation5 + $0xd8] sm:$0xff]
        %v296 = vld [vmem:[#allocation5 + $0xe0] sm:$0xff]
        %v297 = vld [vmem:[#allocation5 + $0xe8] sm:$0xff]
        %v298 = vld [vmem:[#allocation5 + $0xf0] sm:$0xff]
        %v299 = vld [vmem:[#allocation5 + $0xf8] sm:$0xff]
        %v300 = vld [vmem:[#allocation5 + $0x100] sm:$0xff]
        %v301 = vld [vmem:[#allocation5 + $0x108] sm:$0xff]
        %v302 = vld [vmem:[#allocation5 + $0x110] sm:$0xff]
        %v303 = vld [vmem:[#allocation5 + $0x118] sm:$0xff]
        %v304 = vld [vmem:[#allocation5 + $0x120] sm:$0xff]
        %v305 = vld [vmem:[#allocation5 + $0x128] sm:$0xff]
        %v306 = vld [vmem:[#allocation5 + $0x130] sm:$0xff]
        %v307 = vld [vmem:[#allocation5 + $0x138] sm:$0xff]
        %v308 = vld [vmem:[#allocation5 + $0x140] sm:$0xff]
        %v309 = vld [vmem:[#allocation5 + $0x148] sm:$0xff]
        %v310 = vld [vmem:[#allocation5 + $0x150] sm:$0xff]
        %v311 = vld [vmem:[#allocation5 + $0x158] sm:$0xff]
        %v312 = vld [vmem:[#allocation5 + $0x160] sm:$0xff]
        %v313 = vld [vmem:[#allocation5 + $0x168] sm:$0xff]
        %v314 = vld [vmem:[#allocation5 + $0x170] sm:$0xff]
        %v315 = vld [vmem:[#allocation5 + $0x178] sm:$0xff]
        %v316 = vld [vmem:[#allocation5 + $0x180] sm:$0xff]
        %v317 = vld [vmem:[#allocation5 + $0x188] sm:$0xff]
        %v318 = vld [vmem:[#allocation5 + $0x190] sm:$0xff]
        %v319 = vld [vmem:[#allocation5 + $0x198] sm:$0xff]
        %v320 = vld [vmem:[#allocation5 + $0x1a0] sm:$0xff]
        %v321 = vld [vmem:[#allocation5 + $0x1a8] sm:$0xff]
        %v322 = vld [vmem:[#allocation5 + $0x1b0] sm:$0xff]
        %v323 = vld [vmem:[#allocation5 + $0x1b8] sm:$0xff]
        %v324 = vld [vmem:[#allocation5 + $0x1c0] sm:$0xff]
        %v325 = vld [vmem:[#allocation5 + $0x1c8] sm:$0xff]
        %v326 = vld [vmem:[#allocation5 + $0x1d0] sm:$0xff]
        %v327 = vld [vmem:[#allocation5 + $0x1d8] sm:$0xff]
        %v328 = vld [vmem:[#allocation5 + $0x1e0] sm:$0xff]
        %v329 = vld [vmem:[#allocation5 + $0x1e8] sm:$0xff]
        %v330 = vld [vmem:[#allocation5 + $0x1f0] sm:$0xff]
        %v331 = vld [vmem:[#allocation5 + $0x1f8] sm:$0xff]
        %v332 = vld [vmem:[#allocation5 + $0x200] sm:$0xff]
        %v333 = vld [vmem:[#allocation5 + $0x208] sm:$0xff]
        %v334 = vld [vmem:[#allocation5 + $0x210] sm:$0xff]
        %v335 = vld [vmem:[#allocation5 + $0x218] sm:$0xff]
        %v336 = vld [vmem:[#allocation5 + $0x220] sm:$0xff]
        %v337 = vld [vmem:[#allocation5 + $0x228] sm:$0xff]
        %v338 = vld [vmem:[#allocation5 + $0x230] sm:$0xff]
        %v339 = vld [vmem:[#allocation5 + $0x238] sm:$0xff]
        %v340 = vld [vmem:[#allocation5 + $0x240] sm:$0xff]
        %v341 = vld [vmem:[#allocation5 + $0x248] sm:$0xff]
        %v342 = vld [vmem:[#allocation5 + $0x250] sm:$0xff]
        %v343 = vld [vmem:[#allocation5 + $0x258] sm:$0xff]
        %v344 = vld [vmem:[#allocation5 + $0x260] sm:$0xff]
        %v345 = vld [vmem:[#allocation5 + $0x268] sm:$0xff]
        %v346 = vld [vmem:[#allocation5 + $0x270] sm:$0xff]
        %v347 = vld [vmem:[#allocation5 + $0x278] sm:$0xff]
        %v348 = vld [vmem:[#allocation5 + $0x280] sm:$0xff]
        %v349 = vld [vmem:[#allocation5 + $0x288] sm:$0xff]
        %v350 = vld [vmem:[#allocation5 + $0x290] sm:$0xff]
        %v351 = vld [vmem:[#allocation5 + $0x298] sm:$0xff]
        %v352 = vld [vmem:[#allocation5 + $0x2a0] sm:$0xff]
        %v353 = vld [vmem:[#allocation5 + $0x2a8] sm:$0xff]
        %v354 = vld [vmem:[#allocation5 + $0x2b0] sm:$0xff]
        %v355 = vld [vmem:[#allocation5 + $0x2b8] sm:$0xff]
        %v356 = vld [vmem:[#allocation5 + $0x2c0] sm:$0xff]
        %v357 = vld [vmem:[#allocation5 + $0x2c8] sm:$0xff]
        %v358 = vld [vmem:[#allocation5 + $0x2d0] sm:$0xff]
        %v359 = vld [vmem:[#allocation5 + $0x2d8] sm:$0xff]
        %v360 = vld [vmem:[#allocation5 + $0x2e0] sm:$0xff]
        %v361 = vld [vmem:[#allocation5 + $0x2e8] sm:$0xff]
        %v362 = vld [vmem:[#allocation5 + $0x2f0] sm:$0xff]
        %v363 = vld [vmem:[#allocation5 + $0x2f8] sm:$0xff]
        %v364 = vld [vmem:[#allocation5 + $0x300] sm:$0xff]
        %v365 = vld [vmem:[#allocation5 + $0x308] sm:$0xff]
        %v366 = vld [vmem:[#allocation5 + $0x310] sm:$0xff]
        %v367 = vld [vmem:[#allocation5 + $0x318] sm:$0xff]
        %v368 = vld [vmem:[#allocation5 + $0x320] sm:$0xff]
        %v369 = vld [vmem:[#allocation5 + $0x328] sm:$0xff]
        %v370 = vld [vmem:[#allocation5 + $0x330] sm:$0xff]
        %v371 = vld [vmem:[#allocation5 + $0x338] sm:$0xff]
        %v372 = vld [vmem:[#allocation5 + $0x340] sm:$0xff]
        %v373 = vld [vmem:[#allocation5 + $0x348] sm:$0xff]
        %v374 = vld [vmem:[#allocation5 + $0x350] sm:$0xff]
        %v375 = vld [vmem:[#allocation5 + $0x358] sm:$0xff]
        %v376 = vld [vmem:[#allocation5 + $0x360] sm:$0xff]
        %v377 = vld [vmem:[#allocation5 + $0x368] sm:$0xff]
        %v378 = vld [vmem:[#allocation5 + $0x370] sm:$0xff]
        %v379 = vld [vmem:[#allocation5 + $0x378] sm:$0xff]
        %v380 = vld [vmem:[#allocation5 + $0x380] sm:$0xff]
        %v381 = vld [vmem:[#allocation5 + $0x388] sm:$0xff]
        %v382 = vld [vmem:[#allocation5 + $0x390] sm:$0xff]
        %v383 = vld [vmem:[#allocation5 + $0x398] sm:$0xff]
        %v384 = vld [vmem:[#allocation5 + $0x3a0] sm:$0xff]
        %v385 = vld [vmem:[#allocation5 + $0x3a8] sm:$0xff]
        %v386 = vld [vmem:[#allocation5 + $0x3b0] sm:$0xff]
        %v387 = vld [vmem:[#allocation5 + $0x3b8] sm:$0xff]
        %v388 = vld [vmem:[#allocation5 + $0x3c0] sm:$0xff]
        %v389 = vld [vmem:[#allocation5 + $0x3c8] sm:$0xff]
        %v390 = vld [vmem:[#allocation5 + $0x3d0] sm:$0xff]
        %v391 = vld [vmem:[#allocation5 + $0x3d8] sm:$0xff]
        %v392 = vld [vmem:[#allocation5 + $0x3e0] sm:$0xff]
        %v393 = vld [vmem:[#allocation5 + $0x3e8] sm:$0xff]
        %v394 = vld [vmem:[#allocation5 + $0x3f0] sm:$0xff]
        %v395 = vld [vmem:[#allocation5 + $0x3f8] sm:$0xff]
        %v396 = vld [vmem:[%s2] sm:$0x3]
        %v398 = vlaneseq
        %v399 = vshrl.u32 %v398, 7
        %v400 = vsub.s32 0, %v399
        %v401 = vrot.slane %v396, %v400
        %v402 = vlaneseq
        %v403 = vshrl.u32 %v402, 7
        %v404 = vsub.s32 1, %v403
        %v405 = vrot.slane %v396, %v404
        %v408 = vand.u32 %v269, 4294901760
        %409 = vmatprep.subr.mxu0 %v408
        %v410 = vand.u32 %v268, 4294901760
        %411 = vmatpush1.msra.mxu0 %v410
        %v412 = vand.u32 %v271, 4294901760
        %413 = vmatprep.subr.mxu0 %v412
        %v414 = vand.u32 %v270, 4294901760
        %415 = vmatpush1.msra.mxu0 %v414
        %v416 = vand.u32 %v273, 4294901760
        %417 = vmatprep.subr.mxu0 %v416
        %v418 = vand.u32 %v272, 4294901760
        %419 = vmatpush1.msra.mxu0 %v418
        %v420 = vand.u32 %v275, 4294901760
        %421 = vmatprep.subr.mxu0 %v420
        %v422 = vand.u32 %v274, 4294901760
        %423 = vmatpush1.msra.mxu0 %v422
        %v424 = vand.u32 %v277, 4294901760
        %425 = vmatprep.subr.mxu0 %v424
        %v426 = vand.u32 %v276, 4294901760
        %427 = vmatpush1.msra.mxu0 %v426
        %v428 = vand.u32 %v279, 4294901760
        %429 = vmatprep.subr.mxu0 %v428
        %v430 = vand.u32 %v278, 4294901760
        %431 = vmatpush1.msra.mxu0 %v430
        %v432 = vand.u32 %v281, 4294901760
        %433 = vmatprep.subr.mxu0 %v432
        %v434 = vand.u32 %v280, 4294901760
        %435 = vmatpush1.msra.mxu0 %v434
        %v436 = vand.u32 %v283, 4294901760
        %437 = vmatprep.subr.mxu0 %v436
        %v438 = vand.u32 %v282, 4294901760
        %439 = vmatpush1.msra.mxu0 %v438
        %v440 = vand.u32 %v285, 4294901760
        %441 = vmatprep.subr.mxu0 %v440
        %v442 = vand.u32 %v284, 4294901760
        %443 = vmatpush1.msra.mxu0 %v442
        %v444 = vand.u32 %v287, 4294901760
        %445 = vmatprep.subr.mxu0 %v444
        %v446 = vand.u32 %v286, 4294901760
        %447 = vmatpush1.msra.mxu0 %v446
        %v448 = vand.u32 %v289, 4294901760
        %449 = vmatprep.subr.mxu0 %v448
        %v450 = vand.u32 %v288, 4294901760
        %451 = vmatpush1.msra.mxu0 %v450
        %v452 = vand.u32 %v291, 4294901760
        %453 = vmatprep.subr.mxu0 %v452
        %v454 = vand.u32 %v290, 4294901760
        %455 = vmatpush1.msra.mxu0 %v454
        %v456 = vand.u32 %v293, 4294901760
        %457 = vmatprep.subr.mxu0 %v456
        %v458 = vand.u32 %v292, 4294901760
        %459 = vmatpush1.msra.mxu0 %v458
        %v460 = vand.u32 %v295, 4294901760
        %461 = vmatprep.subr.mxu0 %v460
        %v462 = vand.u32 %v294, 4294901760
        %463 = vmatpush1.msra.mxu0 %v462
        %v464 = vand.u32 %v297, 4294901760
        %465 = vmatprep.subr.mxu0 %v464
        %v466 = vand.u32 %v296, 4294901760
        %467 = vmatpush1.msra.mxu0 %v466
        %v468 = vand.u32 %v299, 4294901760
        %469 = vmatprep.subr.mxu0 %v468
        %v470 = vand.u32 %v298, 4294901760
        %471 = vmatpush1.msra.mxu0 %v470
        %v472 = vand.u32 %v301, 4294901760
        %473 = vmatprep.subr.mxu0 %v472
        %v474 = vand.u32 %v300, 4294901760
        %475 = vmatpush1.msra.mxu0 %v474
        %v476 = vand.u32 %v303, 4294901760
        %477 = vmatprep.subr.mxu0 %v476
        %v478 = vand.u32 %v302, 4294901760
        %479 = vmatpush1.msra.mxu0 %v478
        %v480 = vand.u32 %v305, 4294901760
        %481 = vmatprep.subr.mxu0 %v480
        %v482 = vand.u32 %v304, 4294901760
        %483 = vmatpush1.msra.mxu0 %v482
        %v484 = vand.u32 %v307, 4294901760
        %485 = vmatprep.subr.mxu0 %v484
        %v486 = vand.u32 %v306, 4294901760
        %487 = vmatpush1.msra.mxu0 %v486
        %v488 = vand.u32 %v309, 4294901760
        %489 = vmatprep.subr.mxu0 %v488
        %v490 = vand.u32 %v308, 4294901760
        %491 = vmatpush1.msra.mxu0 %v490
        %v492 = vand.u32 %v311, 4294901760
        %493 = vmatprep.subr.mxu0 %v492
        %v494 = vand.u32 %v310, 4294901760
        %495 = vmatpush1.msra.mxu0 %v494
        %v496 = vand.u32 %v313, 4294901760
        %497 = vmatprep.subr.mxu0 %v496
        %v498 = vand.u32 %v312, 4294901760
        %499 = vmatpush1.msra.mxu0 %v498
        %v500 = vand.u32 %v315, 4294901760
        %501 = vmatprep.subr.mxu0 %v500
        %v502 = vand.u32 %v314, 4294901760
        %503 = vmatpush1.msra.mxu0 %v502
        %v504 = vand.u32 %v317, 4294901760
        %505 = vmatprep.subr.mxu0 %v504
        %v506 = vand.u32 %v316, 4294901760
        %507 = vmatpush1.msra.mxu0 %v506
        %v508 = vand.u32 %v319, 4294901760
        %509 = vmatprep.subr.mxu0 %v508
        %v510 = vand.u32 %v318, 4294901760
        %511 = vmatpush1.msra.mxu0 %v510
        %v512 = vand.u32 %v321, 4294901760
        %513 = vmatprep.subr.mxu0 %v512
        %v514 = vand.u32 %v320, 4294901760
        %515 = vmatpush1.msra.mxu0 %v514
        %v516 = vand.u32 %v323, 4294901760
        %517 = vmatprep.subr.mxu0 %v516
        %v518 = vand.u32 %v322, 4294901760
        %519 = vmatpush1.msra.mxu0 %v518
        %v520 = vand.u32 %v325, 4294901760
        %521 = vmatprep.subr.mxu0 %v520
        %v522 = vand.u32 %v324, 4294901760
        %523 = vmatpush1.msra.mxu0 %v522
        %v524 = vand.u32 %v327, 4294901760
        %525 = vmatprep.subr.mxu0 %v524
        %v526 = vand.u32 %v326, 4294901760
        %527 = vmatpush1.msra.mxu0 %v526
        %v528 = vand.u32 %v329, 4294901760
        %529 = vmatprep.subr.mxu0 %v528
        %v530 = vand.u32 %v328, 4294901760
        %531 = vmatpush1.msra.mxu0 %v530
        %v532 = vand.u32 %v331, 4294901760
        %533 = vmatprep.subr.mxu0 %v532
        %v534 = vand.u32 %v330, 4294901760
        %535 = vmatpush1.msra.mxu0 %v534
        %v536 = vand.u32 %v265, 4294901760
        %v537 = vsub.f32 %v265, %v536
        %v538 = vand.u32 %v537, 4294901760
        %v539 = vsub.f32 %v537, %v538
        %v540 = vand.u32 %v539, 4294901760
        %541 = vmatprep.mubr.f32.mxu0 %v540
        %v542 = vand.u32 %v264, 4294901760
        %v543 = vsub.f32 %v264, %v542
        %v544 = vand.u32 %v543, 4294901760
        %v545 = vsub.f32 %v543, %v544
        %v546 = vand.u32 %v545, 4294901760
        %547 = vmatmul.mubr.f32.gmra.mrb[0].mxu0 %v546
        %v548 = vpop.f32.mrb[0].mxu0
        %v549 = vadd.f32 %v401, %v548
        %v550 = vpop.f32.mrb[0].mxu0
        %v551 = vadd.f32 %v405, %v550
        %552 = vdwg.mxu0
        %v553 = vand.u32 %v269, 4294901760
        %v554 = vsub.f32 %v269, %v553
        %v555 = vand.u32 %v554, 4294901760
        %v556 = vsub.f32 %v554, %v555
        %v557 = vand.u32 %v556, 4294901760
        %558 = vmatprep.subr.mxu0 %v557
        %v559 = vand.u32 %v268, 4294901760
        %v560 = vsub.f32 %v268, %v559
        %v561 = vand.u32 %v560, 4294901760
        %v562 = vsub.f32 %v560, %v561
        %v563 = vand.u32 %v562, 4294901760
        %564 = vmatpush1.msra.mxu0 %v563
        %v565 = vand.u32 %v271, 4294901760
        %v566 = vsub.f32 %v271, %v565
        %v567 = vand.u32 %v566, 4294901760
        %v568 = vsub.f32 %v566, %v567
        %v569 = vand.u32 %v568, 4294901760
        %570 = vmatprep.subr.mxu0 %v569
        %v571 = vand.u32 %v270, 4294901760
        %v572 = vsub.f32 %v270, %v571
        %v573 = vand.u32 %v572, 4294901760
        %v574 = vsub.f32 %v572, %v573
        %v575 = vand.u32 %v574, 4294901760
        %576 = vmatpush1.msra.mxu0 %v575
        %v577 = vand.u32 %v273, 4294901760
        %v578 = vsub.f32 %v273, %v577
        %v579 = vand.u32 %v578, 4294901760
        %v580 = vsub.f32 %v578, %v579
        %v581 = vand.u32 %v580, 4294901760
        %582 = vmatprep.subr.mxu0 %v581
        %v583 = vand.u32 %v272, 4294901760
        %v584 = vsub.f32 %v272, %v583
        %v585 = vand.u32 %v584, 4294901760
        %v586 = vsub.f32 %v584, %v585
        %v587 = vand.u32 %v586, 4294901760
        %588 = vmatpush1.msra.mxu0 %v587
        %v589 = vand.u32 %v275, 4294901760
        %v590 = vsub.f32 %v275, %v589
        %v591 = vand.u32 %v590, 4294901760
        %v592 = vsub.f32 %v590, %v591
        %v593 = vand.u32 %v592, 4294901760
        %594 = vmatprep.subr.mxu0 %v593
        %v595 = vand.u32 %v274, 4294901760
        %v596 = vsub.f32 %v274, %v595
        %v597 = vand.u32 %v596, 4294901760
        %v598 = vsub.f32 %v596, %v597
        %v599 = vand.u32 %v598, 4294901760
        %600 = vmatpush1.msra.mxu0 %v599
        %v601 = vand.u32 %v277, 4294901760
        %v602 = vsub.f32 %v277, %v601
        %v603 = vand.u32 %v602, 4294901760
        %v604 = vsub.f32 %v602, %v603
        %v605 = vand.u32 %v604, 4294901760
        %606 = vmatprep.subr.mxu0 %v605
        %v607 = vand.u32 %v276, 4294901760
        %v608 = vsub.f32 %v276, %v607
        %v609 = vand.u32 %v608, 4294901760
        %v610 = vsub.f32 %v608, %v609
        %v611 = vand.u32 %v610, 4294901760
        %612 = vmatpush1.msra.mxu0 %v611
        %v613 = vand.u32 %v279, 4294901760
        %v614 = vsub.f32 %v279, %v613
        %v615 = vand.u32 %v614, 4294901760
        %v616 = vsub.f32 %v614, %v615
        %v617 = vand.u32 %v616, 4294901760
        %618 = vmatprep.subr.mxu0 %v617
        %v619 = vand.u32 %v278, 4294901760
        %v620 = vsub.f32 %v278, %v619
        %v621 = vand.u32 %v620, 4294901760
        %v622 = vsub.f32 %v620, %v621
        %v623 = vand.u32 %v622, 4294901760
        %624 = vmatpush1.msra.mxu0 %v623
        %v625 = vand.u32 %v281, 4294901760
        %v626 = vsub.f32 %v281, %v625
        %v627 = vand.u32 %v626, 4294901760
        %v628 = vsub.f32 %v626, %v627
        %v629 = vand.u32 %v628, 4294901760
        %630 = vmatprep.subr.mxu0 %v629
        %v631 = vand.u32 %v280, 4294901760
        %v632 = vsub.f32 %v280, %v631
        %v633 = vand.u32 %v632, 4294901760
        %v634 = vsub.f32 %v632, %v633
        %v635 = vand.u32 %v634, 4294901760
        %636 = vmatpush1.msra.mxu0 %v635
        %v637 = vand.u32 %v283, 4294901760
        %v638 = vsub.f32 %v283, %v637
        %v639 = vand.u32 %v638, 4294901760
        %v640 = vsub.f32 %v638, %v639
        %v641 = vand.u32 %v640, 4294901760
        %642 = vmatprep.subr.mxu0 %v641
        %v643 = vand.u32 %v282, 4294901760
        %v644 = vsub.f32 %v282, %v643
        %v645 = vand.u32 %v644, 4294901760
        %v646 = vsub.f32 %v644, %v645
        %v647 = vand.u32 %v646, 4294901760
        %648 = vmatpush1.msra.mxu0 %v647
        %v649 = vand.u32 %v285, 4294901760
        %v650 = vsub.f32 %v285, %v649
        %v651 = vand.u32 %v650, 4294901760
        %v652 = vsub.f32 %v650, %v651
        %v653 = vand.u32 %v652, 4294901760
        %654 = vmatprep.subr.mxu0 %v653
        %v655 = vand.u32 %v284, 4294901760
        %v656 = vsub.f32 %v284, %v655
        %v657 = vand.u32 %v656, 4294901760
        %v658 = vsub.f32 %v656, %v657
        %v659 = vand.u32 %v658, 4294901760
        %660 = vmatpush1.msra.mxu0 %v659
        %v661 = vand.u32 %v287, 4294901760
        %v662 = vsub.f32 %v287, %v661
        %v663 = vand.u32 %v662, 4294901760
        %v664 = vsub.f32 %v662, %v663
        %v665 = vand.u32 %v664, 4294901760
        %666 = vmatprep.subr.mxu0 %v665
        %v667 = vand.u32 %v286, 4294901760
        %v668 = vsub.f32 %v286, %v667
        %v669 = vand.u32 %v668, 4294901760
        %v670 = vsub.f32 %v668, %v669
        %v671 = vand.u32 %v670, 4294901760
        %672 = vmatpush1.msra.mxu0 %v671
        %v673 = vand.u32 %v289, 4294901760
        %v674 = vsub.f32 %v289, %v673
        %v675 = vand.u32 %v674, 4294901760
        %v676 = vsub.f32 %v674, %v675
        %v677 = vand.u32 %v676, 4294901760
        %678 = vmatprep.subr.mxu0 %v677
        %v679 = vand.u32 %v288, 4294901760
        %v680 = vsub.f32 %v288, %v679
        %v681 = vand.u32 %v680, 4294901760
        %v682 = vsub.f32 %v680, %v681
        %v683 = vand.u32 %v682, 4294901760
        %684 = vmatpush1.msra.mxu0 %v683
        %v685 = vand.u32 %v291, 4294901760
        %v686 = vsub.f32 %v291, %v685
        %v687 = vand.u32 %v686, 4294901760
        %v688 = vsub.f32 %v686, %v687
        %v689 = vand.u32 %v688, 4294901760
        %690 = vmatprep.subr.mxu0 %v689
        %v691 = vand.u32 %v290, 4294901760
        %v692 = vsub.f32 %v290, %v691
        %v693 = vand.u32 %v692, 4294901760
        %v694 = vsub.f32 %v692, %v693
        %v695 = vand.u32 %v694, 4294901760
        %696 = vmatpush1.msra.mxu0 %v695
        %v697 = vand.u32 %v293, 4294901760
        %v698 = vsub.f32 %v293, %v697
        %v699 = vand.u32 %v698, 4294901760
        %v700 = vsub.f32 %v698, %v699
        %v701 = vand.u32 %v700, 4294901760
        %702 = vmatprep.subr.mxu0 %v701
        %v703 = vand.u32 %v292, 4294901760
        %v704 = vsub.f32 %v292, %v703
        %v705 = vand.u32 %v704, 4294901760
        %v706 = vsub.f32 %v704, %v705
        %v707 = vand.u32 %v706, 4294901760
        %708 = vmatpush1.msra.mxu0 %v707
        %v709 = vand.u32 %v295, 4294901760
        %v710 = vsub.f32 %v295, %v709
        %v711 = vand.u32 %v710, 4294901760
        %v712 = vsub.f32 %v710, %v711
        %v713 = vand.u32 %v712, 4294901760
        %714 = vmatprep.subr.mxu0 %v713
        %v715 = vand.u32 %v294, 4294901760
        %v716 = vsub.f32 %v294, %v715
        %v717 = vand.u32 %v716, 4294901760
        %v718 = vsub.f32 %v716, %v717
        %v719 = vand.u32 %v718, 4294901760
        %720 = vmatpush1.msra.mxu0 %v719
        %v721 = vand.u32 %v297, 4294901760
        %v722 = vsub.f32 %v297, %v721
        %v723 = vand.u32 %v722, 4294901760
        %v724 = vsub.f32 %v722, %v723
        %v725 = vand.u32 %v724, 4294901760
        %726 = vmatprep.subr.mxu0 %v725
        %v727 = vand.u32 %v296, 4294901760
        %v728 = vsub.f32 %v296, %v727
        %v729 = vand.u32 %v728, 4294901760
        %v730 = vsub.f32 %v728, %v729
        %v731 = vand.u32 %v730, 4294901760
        %732 = vmatpush1.msra.mxu0 %v731
        %v733 = vand.u32 %v299, 4294901760
        %v734 = vsub.f32 %v299, %v733
        %v735 = vand.u32 %v734, 4294901760
        %v736 = vsub.f32 %v734, %v735
        %v737 = vand.u32 %v736, 4294901760
        %738 = vmatprep.subr.mxu0 %v737
        %v739 = vand.u32 %v298, 4294901760
        %v740 = vsub.f32 %v298, %v739
        %v741 = vand.u32 %v740, 4294901760
        %v742 = vsub.f32 %v740, %v741
        %v743 = vand.u32 %v742, 4294901760
        %744 = vmatpush1.msra.mxu0 %v743
        %v745 = vand.u32 %v301, 4294901760
        %v746 = vsub.f32 %v301, %v745
        %v747 = vand.u32 %v746, 4294901760
        %v748 = vsub.f32 %v746, %v747
        %v749 = vand.u32 %v748, 4294901760
        %750 = vmatprep.subr.mxu0 %v749
        %v751 = vand.u32 %v300, 4294901760
        %v752 = vsub.f32 %v300, %v751
        %v753 = vand.u32 %v752, 4294901760
        %v754 = vsub.f32 %v752, %v753
        %v755 = vand.u32 %v754, 4294901760
        %756 = vmatpush1.msra.mxu0 %v755
        %v757 = vand.u32 %v303, 4294901760
        %v758 = vsub.f32 %v303, %v757
        %v759 = vand.u32 %v758, 4294901760
        %v760 = vsub.f32 %v758, %v759
        %v761 = vand.u32 %v760, 4294901760
        %762 = vmatprep.subr.mxu0 %v761
        %v763 = vand.u32 %v302, 4294901760
        %v764 = vsub.f32 %v302, %v763
        %v765 = vand.u32 %v764, 4294901760
        %v766 = vsub.f32 %v764, %v765
        %v767 = vand.u32 %v766, 4294901760
        %768 = vmatpush1.msra.mxu0 %v767
        %v769 = vand.u32 %v305, 4294901760
        %v770 = vsub.f32 %v305, %v769
        %v771 = vand.u32 %v770, 4294901760
        %v772 = vsub.f32 %v770, %v771
        %v773 = vand.u32 %v772, 4294901760
        %774 = vmatprep.subr.mxu0 %v773
        %v775 = vand.u32 %v304, 4294901760
        %v776 = vsub.f32 %v304, %v775
        %v777 = vand.u32 %v776, 4294901760
        %v778 = vsub.f32 %v776, %v777
        %v779 = vand.u32 %v778, 4294901760
        %780 = vmatpush1.msra.mxu0 %v779
        %v781 = vand.u32 %v307, 4294901760
        %v782 = vsub.f32 %v307, %v781
        %v783 = vand.u32 %v782, 4294901760
        %v784 = vsub.f32 %v782, %v783
        %v785 = vand.u32 %v784, 4294901760
        %786 = vmatprep.subr.mxu0 %v785
        %v787 = vand.u32 %v306, 4294901760
        %v788 = vsub.f32 %v306, %v787
        %v789 = vand.u32 %v788, 4294901760
        %v790 = vsub.f32 %v788, %v789
        %v791 = vand.u32 %v790, 4294901760
        %792 = vmatpush1.msra.mxu0 %v791
        %v793 = vand.u32 %v309, 4294901760
        %v794 = vsub.f32 %v309, %v793
        %v795 = vand.u32 %v794, 4294901760
        %v796 = vsub.f32 %v794, %v795
        %v797 = vand.u32 %v796, 4294901760
        %798 = vmatprep.subr.mxu0 %v797
        %v799 = vand.u32 %v308, 4294901760
        %v800 = vsub.f32 %v308, %v799
        %v801 = vand.u32 %v800, 4294901760
        %v802 = vsub.f32 %v800, %v801
        %v803 = vand.u32 %v802, 4294901760
        %804 = vmatpush1.msra.mxu0 %v803
        %v805 = vand.u32 %v311, 4294901760
        %v806 = vsub.f32 %v311, %v805
        %v807 = vand.u32 %v806, 4294901760
        %v808 = vsub.f32 %v806, %v807
        %v809 = vand.u32 %v808, 4294901760
        %810 = vmatprep.subr.mxu0 %v809
        %v811 = vand.u32 %v310, 4294901760
        %v812 = vsub.f32 %v310, %v811
        %v813 = vand.u32 %v812, 4294901760
        %v814 = vsub.f32 %v812, %v813
        %v815 = vand.u32 %v814, 4294901760
        %816 = vmatpush1.msra.mxu0 %v815
        %v817 = vand.u32 %v313, 4294901760
        %v818 = vsub.f32 %v313, %v817
        %v819 = vand.u32 %v818, 4294901760
        %v820 = vsub.f32 %v818, %v819
        %v821 = vand.u32 %v820, 4294901760
        %822 = vmatprep.subr.mxu0 %v821
        %v823 = vand.u32 %v312, 4294901760
        %v824 = vsub.f32 %v312, %v823
        %v825 = vand.u32 %v824, 4294901760
        %v826 = vsub.f32 %v824, %v825
        %v827 = vand.u32 %v826, 4294901760
        %828 = vmatpush1.msra.mxu0 %v827
        %v829 = vand.u32 %v315, 4294901760
        %v830 = vsub.f32 %v315, %v829
        %v831 = vand.u32 %v830, 4294901760
        %v832 = vsub.f32 %v830, %v831
        %v833 = vand.u32 %v832, 4294901760
        %834 = vmatprep.subr.mxu0 %v833
        %v835 = vand.u32 %v314, 4294901760
        %v836 = vsub.f32 %v314, %v835
        %v837 = vand.u32 %v836, 4294901760
        %v838 = vsub.f32 %v836, %v837
        %v839 = vand.u32 %v838, 4294901760
        %840 = vmatpush1.msra.mxu0 %v839
        %v841 = vand.u32 %v317, 4294901760
        %v842 = vsub.f32 %v317, %v841
        %v843 = vand.u32 %v842, 4294901760
        %v844 = vsub.f32 %v842, %v843
        %v845 = vand.u32 %v844, 4294901760
        %846 = vmatprep.subr.mxu0 %v845
        %v847 = vand.u32 %v316, 4294901760
        %v848 = vsub.f32 %v316, %v847
        %v849 = vand.u32 %v848, 4294901760
        %v850 = vsub.f32 %v848, %v849
        %v851 = vand.u32 %v850, 4294901760
        %852 = vmatpush1.msra.mxu0 %v851
        %v853 = vand.u32 %v319, 4294901760
        %v854 = vsub.f32 %v319, %v853
        %v855 = vand.u32 %v854, 4294901760
        %v856 = vsub.f32 %v854, %v855
        %v857 = vand.u32 %v856, 4294901760
        %858 = vmatprep.subr.mxu0 %v857
        %v859 = vand.u32 %v318, 4294901760
        %v860 = vsub.f32 %v318, %v859
        %v861 = vand.u32 %v860, 4294901760
        %v862 = vsub.f32 %v860, %v861
        %v863 = vand.u32 %v862, 4294901760
        %864 = vmatpush1.msra.mxu0 %v863
        %v865 = vand.u32 %v321, 4294901760
        %v866 = vsub.f32 %v321, %v865
        %v867 = vand.u32 %v866, 4294901760
        %v868 = vsub.f32 %v866, %v867
        %v869 = vand.u32 %v868, 4294901760
        %870 = vmatprep.subr.mxu0 %v869
        %v871 = vand.u32 %v320, 4294901760
        %v872 = vsub.f32 %v320, %v871
        %v873 = vand.u32 %v872, 4294901760
        %v874 = vsub.f32 %v872, %v873
        %v875 = vand.u32 %v874, 4294901760
        %876 = vmatpush1.msra.mxu0 %v875
        %v877 = vand.u32 %v323, 4294901760
        %v878 = vsub.f32 %v323, %v877
        %v879 = vand.u32 %v878, 4294901760
        %v880 = vsub.f32 %v878, %v879
        %v881 = vand.u32 %v880, 4294901760
        %882 = vmatprep.subr.mxu0 %v881
        %v883 = vand.u32 %v322, 4294901760
        %v884 = vsub.f32 %v322, %v883
        %v885 = vand.u32 %v884, 4294901760
        %v886 = vsub.f32 %v884, %v885
        %v887 = vand.u32 %v886, 4294901760
        %888 = vmatpush1.msra.mxu0 %v887
        %v889 = vand.u32 %v325, 4294901760
        %v890 = vsub.f32 %v325, %v889
        %v891 = vand.u32 %v890, 4294901760
        %v892 = vsub.f32 %v890, %v891
        %v893 = vand.u32 %v892, 4294901760
        %894 = vmatprep.subr.mxu0 %v893
        %v895 = vand.u32 %v324, 4294901760
        %v896 = vsub.f32 %v324, %v895
        %v897 = vand.u32 %v896, 4294901760
        %v898 = vsub.f32 %v896, %v897
        %v899 = vand.u32 %v898, 4294901760
        %900 = vmatpush1.msra.mxu0 %v899
        %v901 = vand.u32 %v327, 4294901760
        %v902 = vsub.f32 %v327, %v901
        %v903 = vand.u32 %v902, 4294901760
        %v904 = vsub.f32 %v902, %v903
        %v905 = vand.u32 %v904, 4294901760
        %906 = vmatprep.subr.mxu0 %v905
        %v907 = vand.u32 %v326, 4294901760
        %v908 = vsub.f32 %v326, %v907
        %v909 = vand.u32 %v908, 4294901760
        %v910 = vsub.f32 %v908, %v909
        %v911 = vand.u32 %v910, 4294901760
        %912 = vmatpush1.msra.mxu0 %v911
        %v913 = vand.u32 %v329, 4294901760
        %v914 = vsub.f32 %v329, %v913
        %v915 = vand.u32 %v914, 4294901760
        %v916 = vsub.f32 %v914, %v915
        %v917 = vand.u32 %v916, 4294901760
        %918 = vmatprep.subr.mxu0 %v917
        %v919 = vand.u32 %v328, 4294901760
        %v920 = vsub.f32 %v328, %v919
        %v921 = vand.u32 %v920, 4294901760
        %v922 = vsub.f32 %v920, %v921
        %v923 = vand.u32 %v922, 4294901760
        %924 = vmatpush1.msra.mxu0 %v923
        %v925 = vand.u32 %v331, 4294901760
        %v926 = vsub.f32 %v331, %v925
        %v927 = vand.u32 %v926, 4294901760
        %v928 = vsub.f32 %v926, %v927
        %v929 = vand.u32 %v928, 4294901760
        %930 = vmatprep.subr.mxu0 %v929
        %v931 = vand.u32 %v330, 4294901760
        %v932 = vsub.f32 %v330, %v931
        %v933 = vand.u32 %v932, 4294901760
        %v934 = vsub.f32 %v932, %v933
        %v935 = vand.u32 %v934, 4294901760
        %936 = vmatpush1.msra.mxu0 %v935
        %v937 = vand.u32 %v265, 4294901760
        %938 = vmatprep.mubr.f32.mxu0 %v937
        %v939 = vand.u32 %v264, 4294901760
        %940 = vmatmul.mubr.f32.gmra.mrb[0].mxu0 %v939
        %v941 = vpop.f32.mrb[0].mxu0
        %v942 = vadd.f32 %v549, %v941
        %v943 = vpop.f32.mrb[0].mxu0
        %v944 = vadd.f32 %v551, %v943
        %945 = vdwg.mxu0
        %v946 = vand.u32 %v269, 4294901760
        %v947 = vsub.f32 %v269, %v946
        %948 = vmatprep.subr.mxu0 %v947
        %v949 = vand.u32 %v268, 4294901760
        %v950 = vsub.f32 %v268, %v949
        %951 = vmatpush1.msra.mxu0 %v950
        %v952 = vand.u32 %v271, 4294901760
        %v953 = vsub.f32 %v271, %v952
        %954 = vmatprep.subr.mxu0 %v953
        %v955 = vand.u32 %v270, 4294901760
        %v956 = vsub.f32 %v270, %v955
        %957 = vmatpush1.msra.mxu0 %v956
        %v958 = vand.u32 %v273, 4294901760
        %v959 = vsub.f32 %v273, %v958
        %960 = vmatprep.subr.mxu0 %v959
        %v961 = vand.u32 %v272, 4294901760
        %v962 = vsub.f32 %v272, %v961
        %963 = vmatpush1.msra.mxu0 %v962
        %v964 = vand.u32 %v275, 4294901760
        %v965 = vsub.f32 %v275, %v964
        %966 = vmatprep.subr.mxu0 %v965
        %v967 = vand.u32 %v274, 4294901760
        %v968 = vsub.f32 %v274, %v967
        %969 = vmatpush1.msra.mxu0 %v968
        %v970 = vand.u32 %v277, 4294901760
        %v971 = vsub.f32 %v277, %v970
        %972 = vmatprep.subr.mxu0 %v971
        %v973 = vand.u32 %v276, 4294901760
        %v974 = vsub.f32 %v276, %v973
        %975 = vmatpush1.msra.mxu0 %v974
        %v976 = vand.u32 %v279, 4294901760
        %v977 = vsub.f32 %v279, %v976
        %978 = vmatprep.subr.mxu0 %v977
        %v979 = vand.u32 %v278, 4294901760
        %v980 = vsub.f32 %v278, %v979
        %981 = vmatpush1.msra.mxu0 %v980
        %v982 = vand.u32 %v281, 4294901760
        %v983 = vsub.f32 %v281, %v982
        %984 = vmatprep.subr.mxu0 %v983
        %v985 = vand.u32 %v280, 4294901760
        %v986 = vsub.f32 %v280, %v985
        %987 = vmatpush1.msra.mxu0 %v986
        %v988 = vand.u32 %v283, 4294901760
        %v989 = vsub.f32 %v283, %v988
        %990 = vmatprep.subr.mxu0 %v989
        %v991 = vand.u32 %v282, 4294901760
        %v992 = vsub.f32 %v282, %v991
        %993 = vmatpush1.msra.mxu0 %v992
        %v994 = vand.u32 %v285, 4294901760
        %v995 = vsub.f32 %v285, %v994
        %996 = vmatprep.subr.mxu0 %v995
        %v997 = vand.u32 %v284, 4294901760
        %v998 = vsub.f32 %v284, %v997
        %999 = vmatpush1.msra.mxu0 %v998
        %v1000 = vand.u32 %v287, 4294901760
        %v1001 = vsub.f32 %v287, %v1000
        %1002 = vmatprep.subr.mxu0 %v1001
        %v1003 = vand.u32 %v286, 4294901760
        %v1004 = vsub.f32 %v286, %v1003
        %1005 = vmatpush1.msra.mxu0 %v1004
        %v1006 = vand.u32 %v289, 4294901760
        %v1007 = vsub.f32 %v289, %v1006
        %1008 = vmatprep.subr.mxu0 %v1007
        %v1009 = vand.u32 %v288, 4294901760
        %v1010 = vsub.f32 %v288, %v1009
        %1011 = vmatpush1.msra.mxu0 %v1010
        %v1012 = vand.u32 %v291, 4294901760
        %v1013 = vsub.f32 %v291, %v1012
        %1014 = vmatprep.subr.mxu0 %v1013
        %v1015 = vand.u32 %v290, 4294901760
        %v1016 = vsub.f32 %v290, %v1015
        %1017 = vmatpush1.msra.mxu0 %v1016
        %v1018 = vand.u32 %v293, 4294901760
        %v1019 = vsub.f32 %v293, %v1018
        %1020 = vmatprep.subr.mxu0 %v1019
        %v1021 = vand.u32 %v292, 4294901760
        %v1022 = vsub.f32 %v292, %v1021
        %1023 = vmatpush1.msra.mxu0 %v1022
        %v1024 = vand.u32 %v295, 4294901760
        %v1025 = vsub.f32 %v295, %v1024
        %1026 = vmatprep.subr.mxu0 %v1025
        %v1027 = vand.u32 %v294, 4294901760
        %v1028 = vsub.f32 %v294, %v1027
        %1029 = vmatpush1.msra.mxu0 %v1028
        %v1030 = vand.u32 %v297, 4294901760
        %v1031 = vsub.f32 %v297, %v1030
        %1032 = vmatprep.subr.mxu0 %v1031
        %v1033 = vand.u32 %v296, 4294901760
        %v1034 = vsub.f32 %v296, %v1033
        %1035 = vmatpush1.msra.mxu0 %v1034
        %v1036 = vand.u32 %v299, 4294901760
        %v1037 = vsub.f32 %v299, %v1036
        %1038 = vmatprep.subr.mxu0 %v1037
        %v1039 = vand.u32 %v298, 4294901760
        %v1040 = vsub.f32 %v298, %v1039
        %1041 = vmatpush1.msra.mxu0 %v1040
        %v1042 = vand.u32 %v301, 4294901760
        %v1043 = vsub.f32 %v301, %v1042
        %1044 = vmatprep.subr.mxu0 %v1043
        %v1045 = vand.u32 %v300, 4294901760
        %v1046 = vsub.f32 %v300, %v1045
        %1047 = vmatpush1.msra.mxu0 %v1046
        %v1048 = vand.u32 %v303, 4294901760
        %v1049 = vsub.f32 %v303, %v1048
        %1050 = vmatprep.subr.mxu0 %v1049
        %v1051 = vand.u32 %v302, 4294901760
        %v1052 = vsub.f32 %v302, %v1051
        %1053 = vmatpush1.msra.mxu0 %v1052
        %v1054 = vand.u32 %v305, 4294901760
        %v1055 = vsub.f32 %v305, %v1054
        %1056 = vmatprep.subr.mxu0 %v1055
        %v1057 = vand.u32 %v304, 4294901760
        %v1058 = vsub.f32 %v304, %v1057
        %1059 = vmatpush1.msra.mxu0 %v1058
        %v1060 = vand.u32 %v307, 4294901760
        %v1061 = vsub.f32 %v307, %v1060
        %1062 = vmatprep.subr.mxu0 %v1061
        %v1063 = vand.u32 %v306, 4294901760
        %v1064 = vsub.f32 %v306, %v1063
        %1065 = vmatpush1.msra.mxu0 %v1064
        %v1066 = vand.u32 %v309, 4294901760
        %v1067 = vsub.f32 %v309, %v1066
        %1068 = vmatprep.subr.mxu0 %v1067
        %v1069 = vand.u32 %v308, 4294901760
        %v1070 = vsub.f32 %v308, %v1069
        %1071 = vmatpush1.msra.mxu0 %v1070
        %v1072 = vand.u32 %v311, 4294901760
        %v1073 = vsub.f32 %v311, %v1072
        %1074 = vmatprep.subr.mxu0 %v1073
        %v1075 = vand.u32 %v310, 4294901760
        %v1076 = vsub.f32 %v310, %v1075
        %1077 = vmatpush1.msra.mxu0 %v1076
        %v1078 = vand.u32 %v313, 4294901760
        %v1079 = vsub.f32 %v313, %v1078
        %1080 = vmatprep.subr.mxu0 %v1079
        %v1081 = vand.u32 %v312, 4294901760
        %v1082 = vsub.f32 %v312, %v1081
        %1083 = vmatpush1.msra.mxu0 %v1082
        %v1084 = vand.u32 %v315, 4294901760
        %v1085 = vsub.f32 %v315, %v1084
        %1086 = vmatprep.subr.mxu0 %v1085
        %v1087 = vand.u32 %v314, 4294901760
        %v1088 = vsub.f32 %v314, %v1087
        %1089 = vmatpush1.msra.mxu0 %v1088
        %v1090 = vand.u32 %v317, 4294901760
        %v1091 = vsub.f32 %v317, %v1090
        %1092 = vmatprep.subr.mxu0 %v1091
        %v1093 = vand.u32 %v316, 4294901760
        %v1094 = vsub.f32 %v316, %v1093
        %1095 = vmatpush1.msra.mxu0 %v1094
        %v1096 = vand.u32 %v319, 4294901760
        %v1097 = vsub.f32 %v319, %v1096
        %1098 = vmatprep.subr.mxu0 %v1097
        %v1099 = vand.u32 %v318, 4294901760
        %v1100 = vsub.f32 %v318, %v1099
        %1101 = vmatpush1.msra.mxu0 %v1100
        %v1102 = vand.u32 %v321, 4294901760
        %v1103 = vsub.f32 %v321, %v1102
        %1104 = vmatprep.subr.mxu0 %v1103
        %v1105 = vand.u32 %v320, 4294901760
        %v1106 = vsub.f32 %v320, %v1105
        %1107 = vmatpush1.msra.mxu0 %v1106
        %v1108 = vand.u32 %v323, 4294901760
        %v1109 = vsub.f32 %v323, %v1108
        %1110 = vmatprep.subr.mxu0 %v1109
        %v1111 = vand.u32 %v322, 4294901760
        %v1112 = vsub.f32 %v322, %v1111
        %1113 = vmatpush1.msra.mxu0 %v1112
        %v1114 = vand.u32 %v325, 4294901760
        %v1115 = vsub.f32 %v325, %v1114
        %1116 = vmatprep.subr.mxu0 %v1115
        %v1117 = vand.u32 %v324, 4294901760
        %v1118 = vsub.f32 %v324, %v1117
        %1119 = vmatpush1.msra.mxu0 %v1118
        %v1120 = vand.u32 %v327, 4294901760
        %v1121 = vsub.f32 %v327, %v1120
        %1122 = vmatprep.subr.mxu0 %v1121
        %v1123 = vand.u32 %v326, 4294901760
        %v1124 = vsub.f32 %v326, %v1123
        %1125 = vmatpush1.msra.mxu0 %v1124
        %v1126 = vand.u32 %v329, 4294901760
        %v1127 = vsub.f32 %v329, %v1126
        %1128 = vmatprep.subr.mxu0 %v1127
        %v1129 = vand.u32 %v328, 4294901760
        %v1130 = vsub.f32 %v328, %v1129
        %1131 = vmatpush1.msra.mxu0 %v1130
        %v1132 = vand.u32 %v331, 4294901760
        %v1133 = vsub.f32 %v331, %v1132
        %1134 = vmatprep.subr.mxu0 %v1133
        %v1135 = vand.u32 %v330, 4294901760
        %v1136 = vsub.f32 %v330, %v1135
        %1137 = vmatpush1.msra.mxu0 %v1136
        %v1138 = vand.u32 %v265, 4294901760
        %v1139 = vsub.f32 %v265, %v1138
        %1140 = vmatprep.mubr.f32.mxu0 %v1139
        %v1141 = vand.u32 %v264, 4294901760
        %v1142 = vsub.f32 %v264, %v1141
        %1143 = vmatmul.mubr.f32.gmra.mrb[0].mxu0 %v1142
        %v1144 = vpop.f32.mrb[0].mxu0
        %v1145 = vadd.f32 %v942, %v1144
        %v1146 = vpop.f32.mrb[0].mxu0
        %v1147 = vadd.f32 %v944, %v1146
        %1148 = vdwg.mxu0
        %v1149 = vand.u32 %v269, 4294901760
        %1150 = vmatprep.subr.mxu0 %v1149
        %v1151 = vand.u32 %v268, 4294901760
        %1152 = vmatpush1.msra.mxu0 %v1151
        %v1153 = vand.u32 %v271, 4294901760
        %1154 = vmatprep.subr.mxu0 %v1153
        %v1155 = vand.u32 %v270, 4294901760
        %1156 = vmatpush1.msra.mxu0 %v1155
        %v1157 = vand.u32 %v273, 4294901760
        %1158 = vmatprep.subr.mxu0 %v1157
        %v1159 = vand.u32 %v272, 4294901760
        %1160 = vmatpush1.msra.mxu0 %v1159
        %v1161 = vand.u32 %v275, 4294901760
        %1162 = vmatprep.subr.mxu0 %v1161
        %v1163 = vand.u32 %v274, 4294901760
        %1164 = vmatpush1.msra.mxu0 %v1163
        %v1165 = vand.u32 %v277, 4294901760
        %1166 = vmatprep.subr.mxu0 %v1165
        %v1167 = vand.u32 %v276, 4294901760
        %1168 = vmatpush1.msra.mxu0 %v1167
        %v1169 = vand.u32 %v279, 4294901760
        %1170 = vmatprep.subr.mxu0 %v1169
        %v1171 = vand.u32 %v278, 4294901760
        %1172 = vmatpush1.msra.mxu0 %v1171
        %v1173 = vand.u32 %v281, 4294901760
        %1174 = vmatprep.subr.mxu0 %v1173
        %v1175 = vand.u32 %v280, 4294901760
        %1176 = vmatpush1.msra.mxu0 %v1175
        %v1177 = vand.u32 %v283, 4294901760
        %1178 = vmatprep.subr.mxu0 %v1177
        %v1179 = vand.u32 %v282, 4294901760
        %1180 = vmatpush1.msra.mxu0 %v1179
        %v1181 = vand.u32 %v285, 4294901760
        %1182 = vmatprep.subr.mxu0 %v1181
        %v1183 = vand.u32 %v284, 4294901760
        %1184 = vmatpush1.msra.mxu0 %v1183
        %v1185 = vand.u32 %v287, 4294901760
        %1186 = vmatprep.subr.mxu0 %v1185
        %v1187 = vand.u32 %v286, 4294901760
        %1188 = vmatpush1.msra.mxu0 %v1187
        %v1189 = vand.u32 %v289, 4294901760
        %1190 = vmatprep.subr.mxu0 %v1189
        %v1191 = vand.u32 %v288, 4294901760
        %1192 = vmatpush1.msra.mxu0 %v1191
        %v1193 = vand.u32 %v291, 4294901760
        %1194 = vmatprep.subr.mxu0 %v1193
        %v1195 = vand.u32 %v290, 4294901760
        %1196 = vmatpush1.msra.mxu0 %v1195
        %v1197 = vand.u32 %v293, 4294901760
        %1198 = vmatprep.subr.mxu0 %v1197
        %v1199 = vand.u32 %v292, 4294901760
        %1200 = vmatpush1.msra.mxu0 %v1199
        %v1201 = vand.u32 %v295, 4294901760
        %1202 = vmatprep.subr.mxu0 %v1201
        %v1203 = vand.u32 %v294, 4294901760
        %1204 = vmatpush1.msra.mxu0 %v1203
        %v1205 = vand.u32 %v297, 4294901760
        %1206 = vmatprep.subr.mxu0 %v1205
        %v1207 = vand.u32 %v296, 4294901760
        %1208 = vmatpush1.msra.mxu0 %v1207
        %v1209 = vand.u32 %v299, 4294901760
        %1210 = vmatprep.subr.mxu0 %v1209
        %v1211 = vand.u32 %v298, 4294901760
        %1212 = vmatpush1.msra.mxu0 %v1211
        %v1213 = vand.u32 %v301, 4294901760
        %1214 = vmatprep.subr.mxu0 %v1213
        %v1215 = vand.u32 %v300, 4294901760
        %1216 = vmatpush1.msra.mxu0 %v1215
        %v1217 = vand.u32 %v303, 4294901760
        %1218 = vmatprep.subr.mxu0 %v1217
        %v1219 = vand.u32 %v302, 4294901760
        %1220 = vmatpush1.msra.mxu0 %v1219
        %v1221 = vand.u32 %v305, 4294901760
        %1222 = vmatprep.subr.mxu0 %v1221
        %v1223 = vand.u32 %v304, 4294901760
        %1224 = vmatpush1.msra.mxu0 %v1223
        %v1225 = vand.u32 %v307, 4294901760
        %1226 = vmatprep.subr.mxu0 %v1225
        %v1227 = vand.u32 %v306, 4294901760
        %1228 = vmatpush1.msra.mxu0 %v1227
        %v1229 = vand.u32 %v309, 4294901760
        %1230 = vmatprep.subr.mxu0 %v1229
        %v1231 = vand.u32 %v308, 4294901760
        %1232 = vmatpush1.msra.mxu0 %v1231
        %v1233 = vand.u32 %v311, 4294901760
        %1234 = vmatprep.subr.mxu0 %v1233
        %v1235 = vand.u32 %v310, 4294901760
        %1236 = vmatpush1.msra.mxu0 %v1235
        %v1237 = vand.u32 %v313, 4294901760
        %1238 = vmatprep.subr.mxu0 %v1237
        %v1239 = vand.u32 %v312, 4294901760
        %1240 = vmatpush1.msra.mxu0 %v1239
        %v1241 = vand.u32 %v315, 4294901760
        %1242 = vmatprep.subr.mxu0 %v1241
        %v1243 = vand.u32 %v314, 4294901760
        %1244 = vmatpush1.msra.mxu0 %v1243
        %v1245 = vand.u32 %v317, 4294901760
        %1246 = vmatprep.subr.mxu0 %v1245
        %v1247 = vand.u32 %v316, 4294901760
        %1248 = vmatpush1.msra.mxu0 %v1247
        %v1249 = vand.u32 %v319, 4294901760
        %1250 = vmatprep.subr.mxu0 %v1249
        %v1251 = vand.u32 %v318, 4294901760
        %1252 = vmatpush1.msra.mxu0 %v1251
        %v1253 = vand.u32 %v321, 4294901760
        %1254 = vmatprep.subr.mxu0 %v1253
        %v1255 = vand.u32 %v320, 4294901760
        %1256 = vmatpush1.msra.mxu0 %v1255
        %v1257 = vand.u32 %v323, 4294901760
        %1258 = vmatprep.subr.mxu0 %v1257
        %v1259 = vand.u32 %v322, 4294901760
        %1260 = vmatpush1.msra.mxu0 %v1259
        %v1261 = vand.u32 %v325, 4294901760
        %1262 = vmatprep.subr.mxu0 %v1261
        %v1263 = vand.u32 %v324, 4294901760
        %1264 = vmatpush1.msra.mxu0 %v1263
        %v1265 = vand.u32 %v327, 4294901760
        %1266 = vmatprep.subr.mxu0 %v1265
        %v1267 = vand.u32 %v326, 4294901760
        %1268 = vmatpush1.msra.mxu0 %v1267
        %v1269 = vand.u32 %v329, 4294901760
        %1270 = vmatprep.subr.mxu0 %v1269
        %v1271 = vand.u32 %v328, 4294901760
        %1272 = vmatpush1.msra.mxu0 %v1271
        %v1273 = vand.u32 %v331, 4294901760
        %1274 = vmatprep.subr.mxu0 %v1273
        %v1275 = vand.u32 %v330, 4294901760
        %1276 = vmatpush1.msra.mxu0 %v1275
        %v1277 = vand.u32 %v265, 4294901760
        %v1278 = vsub.f32 %v265, %v1277
        %v1279 = vand.u32 %v1278, 4294901760
        %1280 = vmatprep.mubr.f32.mxu0 %v1279
        %v1281 = vand.u32 %v264, 4294901760
        %v1282 = vsub.f32 %v264, %v1281
        %v1283 = vand.u32 %v1282, 4294901760
        %1284 = vmatmul.mubr.f32.gmra.mrb[0].mxu0 %v1283
        %v1285 = vpop.f32.mrb[0].mxu0
        %v1286 = vadd.f32 %v1145, %v1285
        %v1287 = vpop.f32.mrb[0].mxu0
        %v1288 = vadd.f32 %v1147, %v1287
        %1289 = vdwg.mxu0
        %v1290 = vand.u32 %v269, 4294901760
        %v1291 = vsub.f32 %v269, %v1290
        %v1292 = vand.u32 %v1291, 4294901760
        %1293 = vmatprep.subr.mxu0 %v1292
        %v1294 = vand.u32 %v268, 4294901760
        %v1295 = vsub.f32 %v268, %v1294
        %v1296 = vand.u32 %v1295, 4294901760
        %1297 = vmatpush1.msra.mxu0 %v1296
        %v1298 = vand.u32 %v271, 4294901760
        %v1299 = vsub.f32 %v271, %v1298
        %v1300 = vand.u32 %v1299, 4294901760
        %1301 = vmatprep.subr.mxu0 %v1300
        %v1302 = vand.u32 %v270, 4294901760
        %v1303 = vsub.f32 %v270, %v1302
        %v1304 = vand.u32 %v1303, 4294901760
        %1305 = vmatpush1.msra.mxu0 %v1304
        %v1306 = vand.u32 %v273, 4294901760
        %v1307 = vsub.f32 %v273, %v1306
        %v1308 = vand.u32 %v1307, 4294901760
        %1309 = vmatprep.subr.mxu0 %v1308
        %v1310 = vand.u32 %v272, 4294901760
        %v1311 = vsub.f32 %v272, %v1310
        %v1312 = vand.u32 %v1311, 4294901760
        %1313 = vmatpush1.msra.mxu0 %v1312
        %v1314 = vand.u32 %v275, 4294901760
        %v1315 = vsub.f32 %v275, %v1314
        %v1316 = vand.u32 %v1315, 4294901760
        %1317 = vmatprep.subr.mxu0 %v1316
        %v1318 = vand.u32 %v274, 4294901760
        %v1319 = vsub.f32 %v274, %v1318
        %v1320 = vand.u32 %v1319, 4294901760
        %1321 = vmatpush1.msra.mxu0 %v1320
        %v1322 = vand.u32 %v277, 4294901760
        %v1323 = vsub.f32 %v277, %v1322
        %v1324 = vand.u32 %v1323, 4294901760
        %1325 = vmatprep.subr.mxu0 %v1324
        %v1326 = vand.u32 %v276, 4294901760
        %v1327 = vsub.f32 %v276, %v1326
        %v1328 = vand.u32 %v1327, 4294901760
        %1329 = vmatpush1.msra.mxu0 %v1328
        %v1330 = vand.u32 %v279, 4294901760
        %v1331 = vsub.f32 %v279, %v1330
        %v1332 = vand.u32 %v1331, 4294901760
        %1333 = vmatprep.subr.mxu0 %v1332
        %v1334 = vand.u32 %v278, 4294901760
        %v1335 = vsub.f32 %v278, %v1334
        %v1336 = vand.u32 %v1335, 4294901760
        %1337 = vmatpush1.msra.mxu0 %v1336
        %v1338 = vand.u32 %v281, 4294901760
        %v1339 = vsub.f32 %v281, %v1338
        %v1340 = vand.u32 %v1339, 4294901760
        %1341 = vmatprep.subr.mxu0 %v1340
        %v1342 = vand.u32 %v280, 4294901760
        %v1343 = vsub.f32 %v280, %v1342
        %v1344 = vand.u32 %v1343, 4294901760
        %1345 = vmatpush1.msra.mxu0 %v1344
        %v1346 = vand.u32 %v283, 4294901760
        %v1347 = vsub.f32 %v283, %v1346
        %v1348 = vand.u32 %v1347, 4294901760
        %1349 = vmatprep.subr.mxu0 %v1348
        %v1350 = vand.u32 %v282, 4294901760
        %v1351 = vsub.f32 %v282, %v1350
        %v1352 = vand.u32 %v1351, 4294901760
        %1353 = vmatpush1.msra.mxu0 %v1352
        %v1354 = vand.u32 %v285, 4294901760
        %v1355 = vsub.f32 %v285, %v1354
        %v1356 = vand.u32 %v1355, 4294901760
        %1357 = vmatprep.subr.mxu0 %v1356
        %v1358 = vand.u32 %v284, 4294901760
        %v1359 = vsub.f32 %v284, %v1358
        %v1360 = vand.u32 %v1359, 4294901760
        %1361 = vmatpush1.msra.mxu0 %v1360
        %v1362 = vand.u32 %v287, 4294901760
        %v1363 = vsub.f32 %v287, %v1362
        %v1364 = vand.u32 %v1363, 4294901760
        %1365 = vmatprep.subr.mxu0 %v1364
        %v1366 = vand.u32 %v286, 4294901760
        %v1367 = vsub.f32 %v286, %v1366
        %v1368 = vand.u32 %v1367, 4294901760
        %1369 = vmatpush1.msra.mxu0 %v1368
        %v1370 = vand.u32 %v289, 4294901760
        %v1371 = vsub.f32 %v289, %v1370
        %v1372 = vand.u32 %v1371, 4294901760
        %1373 = vmatprep.subr.mxu0 %v1372
        %v1374 = vand.u32 %v288, 4294901760
        %v1375 = vsub.f32 %v288, %v1374
        %v1376 = vand.u32 %v1375, 4294901760
        %1377 = vmatpush1.msra.mxu0 %v1376
        %v1378 = vand.u32 %v291, 4294901760
        %v1379 = vsub.f32 %v291, %v1378
        %v1380 = vand.u32 %v1379, 4294901760
        %1381 = vmatprep.subr.mxu0 %v1380
        %v1382 = vand.u32 %v290, 4294901760
        %v1383 = vsub.f32 %v290, %v1382
        %v1384 = vand.u32 %v1383, 4294901760
        %1385 = vmatpush1.msra.mxu0 %v1384
        %v1386 = vand.u32 %v293, 4294901760
        %v1387 = vsub.f32 %v293, %v1386
        %v1388 = vand.u32 %v1387, 4294901760
        %1389 = vmatprep.subr.mxu0 %v1388
        %v1390 = vand.u32 %v292, 4294901760
        %v1391 = vsub.f32 %v292, %v1390
        %v1392 = vand.u32 %v1391, 4294901760
        %1393 = vmatpush1.msra.mxu0 %v1392
        %v1394 = vand.u32 %v295, 4294901760
        %v1395 = vsub.f32 %v295, %v1394
        %v1396 = vand.u32 %v1395, 4294901760
        %1397 = vmatprep.subr.mxu0 %v1396
        %v1398 = vand.u32 %v294, 4294901760
        %v1399 = vsub.f32 %v294, %v1398
        %v1400 = vand.u32 %v1399, 4294901760
        %1401 = vmatpush1.msra.mxu0 %v1400
        %v1402 = vand.u32 %v297, 4294901760
        %v1403 = vsub.f32 %v297, %v1402
        %v1404 = vand.u32 %v1403, 4294901760
        %1405 = vmatprep.subr.mxu0 %v1404
        %v1406 = vand.u32 %v296, 4294901760
        %v1407 = vsub.f32 %v296, %v1406
        %v1408 = vand.u32 %v1407, 4294901760
        %1409 = vmatpush1.msra.mxu0 %v1408
        %v1410 = vand.u32 %v299, 4294901760
        %v1411 = vsub.f32 %v299, %v1410
        %v1412 = vand.u32 %v1411, 4294901760
        %1413 = vmatprep.subr.mxu0 %v1412
        %v1414 = vand.u32 %v298, 4294901760
        %v1415 = vsub.f32 %v298, %v1414
        %v1416 = vand.u32 %v1415, 4294901760
        %1417 = vmatpush1.msra.mxu0 %v1416
        %v1418 = vand.u32 %v301, 4294901760
        %v1419 = vsub.f32 %v301, %v1418
        %v1420 = vand.u32 %v1419, 4294901760
        %1421 = vmatprep.subr.mxu0 %v1420
        %v1422 = vand.u32 %v300, 4294901760
        %v1423 = vsub.f32 %v300, %v1422
        %v1424 = vand.u32 %v1423, 4294901760
        %1425 = vmatpush1.msra.mxu0 %v1424
        %v1426 = vand.u32 %v303, 4294901760
        %v1427 = vsub.f32 %v303, %v1426
        %v1428 = vand.u32 %v1427, 4294901760
        %1429 = vmatprep.subr.mxu0 %v1428
        %v1430 = vand.u32 %v302, 4294901760
        %v1431 = vsub.f32 %v302, %v1430
        %v1432 = vand.u32 %v1431, 4294901760
        %1433 = vmatpush1.msra.mxu0 %v1432
        %v1434 = vand.u32 %v305, 4294901760
        %v1435 = vsub.f32 %v305, %v1434
        %v1436 = vand.u32 %v1435, 4294901760
        %1437 = vmatprep.subr.mxu0 %v1436
        %v1438 = vand.u32 %v304, 4294901760
        %v1439 = vsub.f32 %v304, %v1438
        %v1440 = vand.u32 %v1439, 4294901760
        %1441 = vmatpush1.msra.mxu0 %v1440
        %v1442 = vand.u32 %v307, 4294901760
        %v1443 = vsub.f32 %v307, %v1442
        %v1444 = vand.u32 %v1443, 4294901760
        %1445 = vmatprep.subr.mxu0 %v1444
        %v1446 = vand.u32 %v306, 4294901760
        %v1447 = vsub.f32 %v306, %v1446
        %v1448 = vand.u32 %v1447, 4294901760
        %1449 = vmatpush1.msra.mxu0 %v1448
        %v1450 = vand.u32 %v309, 4294901760
        %v1451 = vsub.f32 %v309, %v1450
        %v1452 = vand.u32 %v1451, 4294901760
        %1453 = vmatprep.subr.mxu0 %v1452
        %v1454 = vand.u32 %v308, 4294901760
        %v1455 = vsub.f32 %v308, %v1454
        %v1456 = vand.u32 %v1455, 4294901760
        %1457 = vmatpush1.msra.mxu0 %v1456
        %v1458 = vand.u32 %v311, 4294901760
        %v1459 = vsub.f32 %v311, %v1458
        %v1460 = vand.u32 %v1459, 4294901760
        %1461 = vmatprep.subr.mxu0 %v1460
        %v1462 = vand.u32 %v310, 4294901760
        %v1463 = vsub.f32 %v310, %v1462
        %v1464 = vand.u32 %v1463, 4294901760
        %1465 = vmatpush1.msra.mxu0 %v1464
        %v1466 = vand.u32 %v313, 4294901760
        %v1467 = vsub.f32 %v313, %v1466
        %v1468 = vand.u32 %v1467, 4294901760
        %1469 = vmatprep.subr.mxu0 %v1468
        %v1470 = vand.u32 %v312, 4294901760
        %v1471 = vsub.f32 %v312, %v1470
        %v1472 = vand.u32 %v1471, 4294901760
        %1473 = vmatpush1.msra.mxu0 %v1472
        %v1474 = vand.u32 %v315, 4294901760
        %v1475 = vsub.f32 %v315, %v1474
        %v1476 = vand.u32 %v1475, 4294901760
        %1477 = vmatprep.subr.mxu0 %v1476
        %v1478 = vand.u32 %v314, 4294901760
        %v1479 = vsub.f32 %v314, %v1478
        %v1480 = vand.u32 %v1479, 4294901760
        %1481 = vmatpush1.msra.mxu0 %v1480
        %v1482 = vand.u32 %v317, 4294901760
        %v1483 = vsub.f32 %v317, %v1482
        %v1484 = vand.u32 %v1483, 4294901760
        %1485 = vmatprep.subr.mxu0 %v1484
        %v1486 = vand.u32 %v316, 4294901760
        %v1487 = vsub.f32 %v316, %v1486
        %v1488 = vand.u32 %v1487, 4294901760
        %1489 = vmatpush1.msra.mxu0 %v1488
        %v1490 = vand.u32 %v319, 4294901760
        %v1491 = vsub.f32 %v319, %v1490
        %v1492 = vand.u32 %v1491, 4294901760
        %1493 = vmatprep.subr.mxu0 %v1492
        %v1494 = vand.u32 %v318, 4294901760
        %v1495 = vsub.f32 %v318, %v1494
        %v1496 = vand.u32 %v1495, 4294901760
        %1497 = vmatpush1.msra.mxu0 %v1496
        %v1498 = vand.u32 %v321, 4294901760
        %v1499 = vsub.f32 %v321, %v1498
        %v1500 = vand.u32 %v1499, 4294901760
        %1501 = vmatprep.subr.mxu0 %v1500
        %v1502 = vand.u32 %v320, 4294901760
        %v1503 = vsub.f32 %v320, %v1502
        %v1504 = vand.u32 %v1503, 4294901760
        %1505 = vmatpush1.msra.mxu0 %v1504
        %v1506 = vand.u32 %v323, 4294901760
        %v1507 = vsub.f32 %v323, %v1506
        %v1508 = vand.u32 %v1507, 4294901760
        %1509 = vmatprep.subr.mxu0 %v1508
        %v1510 = vand.u32 %v322, 4294901760
        %v1511 = vsub.f32 %v322, %v1510
        %v1512 = vand.u32 %v1511, 4294901760
        %1513 = vmatpush1.msra.mxu0 %v1512
        %v1514 = vand.u32 %v325, 4294901760
        %v1515 = vsub.f32 %v325, %v1514
        %v1516 = vand.u32 %v1515, 4294901760
        %1517 = vmatprep.subr.mxu0 %v1516
        %v1518 = vand.u32 %v324, 4294901760
        %v1519 = vsub.f32 %v324, %v1518
        %v1520 = vand.u32 %v1519, 4294901760
        %1521 = vmatpush1.msra.mxu0 %v1520
        %v1522 = vand.u32 %v327, 4294901760
        %v1523 = vsub.f32 %v327, %v1522
        %v1524 = vand.u32 %v1523, 4294901760
        %1525 = vmatprep.subr.mxu0 %v1524
        %v1526 = vand.u32 %v326, 4294901760
        %v1527 = vsub.f32 %v326, %v1526
        %v1528 = vand.u32 %v1527, 4294901760
        %1529 = vmatpush1.msra.mxu0 %v1528
        %v1530 = vand.u32 %v329, 4294901760
        %v1531 = vsub.f32 %v329, %v1530
        %v1532 = vand.u32 %v1531, 4294901760
        %1533 = vmatprep.subr.mxu0 %v1532
        %v1534 = vand.u32 %v328, 4294901760
        %v1535 = vsub.f32 %v328, %v1534
        %v1536 = vand.u32 %v1535, 4294901760
        %1537 = vmatpush1.msra.mxu0 %v1536
        %v1538 = vand.u32 %v331, 4294901760
        %v1539 = vsub.f32 %v331, %v1538
        %v1540 = vand.u32 %v1539, 4294901760
        %1541 = vmatprep.subr.mxu0 %v1540
        %v1542 = vand.u32 %v330, 4294901760
        %v1543 = vsub.f32 %v330, %v1542
        %v1544 = vand.u32 %v1543, 4294901760
        %1545 = vmatpush1.msra.mxu0 %v1544
        %v1546 = vand.u32 %v265, 4294901760
        %1547 = vmatprep.mubr.f32.mxu0 %v1546
        %v1548 = vand.u32 %v264, 4294901760
        %1549 = vmatmul.mubr.f32.gmra.mrb[0].mxu0 %v1548
        %v1550 = vpop.f32.mrb[0].mxu0
        %v1551 = vadd.f32 %v1286, %v1550
        %v1552 = vpop.f32.mrb[0].mxu0
        %v1553 = vadd.f32 %v1288, %v1552
        %1554 = vdwg.mxu0
        %v1555 = vand.u32 %v269, 4294901760
        %1556 = vmatprep.subr.mxu0 %v1555
        %v1557 = vand.u32 %v268, 4294901760
        %1558 = vmatpush1.msra.mxu0 %v1557
        %v1559 = vand.u32 %v271, 4294901760
        %1560 = vmatprep.subr.mxu0 %v1559
        %v1561 = vand.u32 %v270, 4294901760
        %1562 = vmatpush1.msra.mxu0 %v1561
        %v1563 = vand.u32 %v273, 4294901760
        %1564 = vmatprep.subr.mxu0 %v1563
        %v1565 = vand.u32 %v272, 4294901760
        %1566 = vmatpush1.msra.mxu0 %v1565
        %v1567 = vand.u32 %v275, 4294901760
        %1568 = vmatprep.subr.mxu0 %v1567
        %v1569 = vand.u32 %v274, 4294901760
        %1570 = vmatpush1.msra.mxu0 %v1569
        %v1571 = vand.u32 %v277, 4294901760
        %1572 = vmatprep.subr.mxu0 %v1571
        %v1573 = vand.u32 %v276, 4294901760
        %1574 = vmatpush1.msra.mxu0 %v1573
        %v1575 = vand.u32 %v279, 4294901760
        %1576 = vmatprep.subr.mxu0 %v1575
        %v1577 = vand.u32 %v278, 4294901760
        %1578 = vmatpush1.msra.mxu0 %v1577
        %v1579 = vand.u32 %v281, 4294901760
        %1580 = vmatprep.subr.mxu0 %v1579
        %v1581 = vand.u32 %v280, 4294901760
        %1582 = vmatpush1.msra.mxu0 %v1581
        %v1583 = vand.u32 %v283, 4294901760
        %1584 = vmatprep.subr.mxu0 %v1583
        %v1585 = vand.u32 %v282, 4294901760
        %1586 = vmatpush1.msra.mxu0 %v1585
        %v1587 = vand.u32 %v285, 4294901760
        %1588 = vmatprep.subr.mxu0 %v1587
        %v1589 = vand.u32 %v284, 4294901760
        %1590 = vmatpush1.msra.mxu0 %v1589
        %v1591 = vand.u32 %v287, 4294901760
        %1592 = vmatprep.subr.mxu0 %v1591
        %v1593 = vand.u32 %v286, 4294901760
        %1594 = vmatpush1.msra.mxu0 %v1593
        %v1595 = vand.u32 %v289, 4294901760
        %1596 = vmatprep.subr.mxu0 %v1595
        %v1597 = vand.u32 %v288, 4294901760
        %1598 = vmatpush1.msra.mxu0 %v1597
        %v1599 = vand.u32 %v291, 4294901760
        %1600 = vmatprep.subr.mxu0 %v1599
        %v1601 = vand.u32 %v290, 4294901760
        %1602 = vmatpush1.msra.mxu0 %v1601
        %v1603 = vand.u32 %v293, 4294901760
        %1604 = vmatprep.subr.mxu0 %v1603
        %v1605 = vand.u32 %v292, 4294901760
        %1606 = vmatpush1.msra.mxu0 %v1605
        %v1607 = vand.u32 %v295, 4294901760
        %1608 = vmatprep.subr.mxu0 %v1607
        %v1609 = vand.u32 %v294, 4294901760
        %1610 = vmatpush1.msra.mxu0 %v1609
        %v1611 = vand.u32 %v297, 4294901760
        %1612 = vmatprep.subr.mxu0 %v1611
        %v1613 = vand.u32 %v296, 4294901760
        %1614 = vmatpush1.msra.mxu0 %v1613
        %v1615 = vand.u32 %v299, 4294901760
        %1616 = vmatprep.subr.mxu0 %v1615
        %v1617 = vand.u32 %v298, 4294901760
        %1618 = vmatpush1.msra.mxu0 %v1617
        %v1619 = vand.u32 %v301, 4294901760
        %1620 = vmatprep.subr.mxu0 %v1619
        %v1621 = vand.u32 %v300, 4294901760
        %1622 = vmatpush1.msra.mxu0 %v1621
        %v1623 = vand.u32 %v303, 4294901760
        %1624 = vmatprep.subr.mxu0 %v1623
        %v1625 = vand.u32 %v302, 4294901760
        %1626 = vmatpush1.msra.mxu0 %v1625
        %v1627 = vand.u32 %v305, 4294901760
        %1628 = vmatprep.subr.mxu0 %v1627
        %v1629 = vand.u32 %v304, 4294901760
        %1630 = vmatpush1.msra.mxu0 %v1629
        %v1631 = vand.u32 %v307, 4294901760
        %1632 = vmatprep.subr.mxu0 %v1631
        %v1633 = vand.u32 %v306, 4294901760
        %1634 = vmatpush1.msra.mxu0 %v1633
        %v1635 = vand.u32 %v309, 4294901760
        %1636 = vmatprep.subr.mxu0 %v1635
        %v1637 = vand.u32 %v308, 4294901760
        %1638 = vmatpush1.msra.mxu0 %v1637
        %v1639 = vand.u32 %v311, 4294901760
        %1640 = vmatprep.subr.mxu0 %v1639
        %v1641 = vand.u32 %v310, 4294901760
        %1642 = vmatpush1.msra.mxu0 %v1641
        %v1643 = vand.u32 %v313, 4294901760
        %1644 = vmatprep.subr.mxu0 %v1643
        %v1645 = vand.u32 %v312, 4294901760
        %1646 = vmatpush1.msra.mxu0 %v1645
        %v1647 = vand.u32 %v315, 4294901760
        %1648 = vmatprep.subr.mxu0 %v1647
        %v1649 = vand.u32 %v314, 4294901760
        %1650 = vmatpush1.msra.mxu0 %v1649
        %v1651 = vand.u32 %v317, 4294901760
        %1652 = vmatprep.subr.mxu0 %v1651
        %v1653 = vand.u32 %v316, 4294901760
        %1654 = vmatpush1.msra.mxu0 %v1653
        %v1655 = vand.u32 %v319, 4294901760
        %1656 = vmatprep.subr.mxu0 %v1655
        %v1657 = vand.u32 %v318, 4294901760
        %1658 = vmatpush1.msra.mxu0 %v1657
        %v1659 = vand.u32 %v321, 4294901760
        %1660 = vmatprep.subr.mxu0 %v1659
        %v1661 = vand.u32 %v320, 4294901760
        %1662 = vmatpush1.msra.mxu0 %v1661
        %v1663 = vand.u32 %v323, 4294901760
        %1664 = vmatprep.subr.mxu0 %v1663
        %v1665 = vand.u32 %v322, 4294901760
        %1666 = vmatpush1.msra.mxu0 %v1665
        %v1667 = vand.u32 %v325, 4294901760
        %1668 = vmatprep.subr.mxu0 %v1667
        %v1669 = vand.u32 %v324, 4294901760
        %1670 = vmatpush1.msra.mxu0 %v1669
        %v1671 = vand.u32 %v327, 4294901760
        %1672 = vmatprep.subr.mxu0 %v1671
        %v1673 = vand.u32 %v326, 4294901760
        %1674 = vmatpush1.msra.mxu0 %v1673
        %v1675 = vand.u32 %v329, 4294901760
        %1676 = vmatprep.subr.mxu0 %v1675
        %v1677 = vand.u32 %v328, 4294901760
        %1678 = vmatpush1.msra.mxu0 %v1677
        %v1679 = vand.u32 %v331, 4294901760
        %1680 = vmatprep.subr.mxu0 %v1679
        %v1681 = vand.u32 %v330, 4294901760
        %1682 = vmatpush1.msra.mxu0 %v1681
        %v1683 = vand.u32 %v265, 4294901760
        %1684 = vmatprep.mubr.f32.mxu0 %v1683
        %v1685 = vand.u32 %v264, 4294901760
        %1686 = vmatmul.mubr.f32.gmra.mrb[0].mxu0 %v1685
        %v1687 = vpop.f32.mrb[0].mxu0
        %v1688 = vadd.f32 %v1551, %v1687
        %v1689 = vpop.f32.mrb[0].mxu0
        %v1690 = vadd.f32 %v1553, %v1689
        %1691 = vdwg.mxu0
        %v1692 = vand.u32 %v333, 4294901760
        %1693 = vmatprep.subr.mxu0 %v1692
        %v1694 = vand.u32 %v332, 4294901760
        %1695 = vmatpush1.msra.mxu0 %v1694
        %v1696 = vand.u32 %v335, 4294901760
        %1697 = vmatprep.subr.mxu0 %v1696
        %v1698 = vand.u32 %v334, 4294901760
        %1699 = vmatpush1.msra.mxu0 %v1698
        %v1700 = vand.u32 %v337, 4294901760
        %1701 = vmatprep.subr.mxu0 %v1700
        %v1702 = vand.u32 %v336, 4294901760
        %1703 = vmatpush1.msra.mxu0 %v1702
        %v1704 = vand.u32 %v339, 4294901760
        %1705 = vmatprep.subr.mxu0 %v1704
        %v1706 = vand.u32 %v338, 4294901760
        %1707 = vmatpush1.msra.mxu0 %v1706
        %v1708 = vand.u32 %v341, 4294901760
        %1709 = vmatprep.subr.mxu0 %v1708
        %v1710 = vand.u32 %v340, 4294901760
        %1711 = vmatpush1.msra.mxu0 %v1710
        %v1712 = vand.u32 %v343, 4294901760
        %1713 = vmatprep.subr.mxu0 %v1712
        %v1714 = vand.u32 %v342, 4294901760
        %1715 = vmatpush1.msra.mxu0 %v1714
        %v1716 = vand.u32 %v345, 4294901760
        %1717 = vmatprep.subr.mxu0 %v1716
        %v1718 = vand.u32 %v344, 4294901760
        %1719 = vmatpush1.msra.mxu0 %v1718
        %v1720 = vand.u32 %v347, 4294901760
        %1721 = vmatprep.subr.mxu0 %v1720
        %v1722 = vand.u32 %v346, 4294901760
        %1723 = vmatpush1.msra.mxu0 %v1722
        %v1724 = vand.u32 %v349, 4294901760
        %1725 = vmatprep.subr.mxu0 %v1724
        %v1726 = vand.u32 %v348, 4294901760
        %1727 = vmatpush1.msra.mxu0 %v1726
        %v1728 = vand.u32 %v351, 4294901760
        %1729 = vmatprep.subr.mxu0 %v1728
        %v1730 = vand.u32 %v350, 4294901760
        %1731 = vmatpush1.msra.mxu0 %v1730
        %v1732 = vand.u32 %v353, 4294901760
        %1733 = vmatprep.subr.mxu0 %v1732
        %v1734 = vand.u32 %v352, 4294901760
        %1735 = vmatpush1.msra.mxu0 %v1734
        %v1736 = vand.u32 %v355, 4294901760
        %1737 = vmatprep.subr.mxu0 %v1736
        %v1738 = vand.u32 %v354, 4294901760
        %1739 = vmatpush1.msra.mxu0 %v1738
        %v1740 = vand.u32 %v357, 4294901760
        %1741 = vmatprep.subr.mxu0 %v1740
        %v1742 = vand.u32 %v356, 4294901760
        %1743 = vmatpush1.msra.mxu0 %v1742
        %v1744 = vand.u32 %v359, 4294901760
        %1745 = vmatprep.subr.mxu0 %v1744
        %v1746 = vand.u32 %v358, 4294901760
        %1747 = vmatpush1.msra.mxu0 %v1746
        %v1748 = vand.u32 %v361, 4294901760
        %1749 = vmatprep.subr.mxu0 %v1748
        %v1750 = vand.u32 %v360, 4294901760
        %1751 = vmatpush1.msra.mxu0 %v1750
        %v1752 = vand.u32 %v363, 4294901760
        %1753 = vmatprep.subr.mxu0 %v1752
        %v1754 = vand.u32 %v362, 4294901760
        %1755 = vmatpush1.msra.mxu0 %v1754
        %v1756 = vand.u32 %v365, 4294901760
        %1757 = vmatprep.subr.mxu0 %v1756
        %v1758 = vand.u32 %v364, 4294901760
        %1759 = vmatpush1.msra.mxu0 %v1758
        %v1760 = vand.u32 %v367, 4294901760
        %1761 = vmatprep.subr.mxu0 %v1760
        %v1762 = vand.u32 %v366, 4294901760
        %1763 = vmatpush1.msra.mxu0 %v1762
        %v1764 = vand.u32 %v369, 4294901760
        %1765 = vmatprep.subr.mxu0 %v1764
        %v1766 = vand.u32 %v368, 4294901760
        %1767 = vmatpush1.msra.mxu0 %v1766
        %v1768 = vand.u32 %v371, 4294901760
        %1769 = vmatprep.subr.mxu0 %v1768
        %v1770 = vand.u32 %v370, 4294901760
        %1771 = vmatpush1.msra.mxu0 %v1770
        %v1772 = vand.u32 %v373, 4294901760
        %1773 = vmatprep.subr.mxu0 %v1772
        %v1774 = vand.u32 %v372, 4294901760
        %1775 = vmatpush1.msra.mxu0 %v1774
        %v1776 = vand.u32 %v375, 4294901760
        %1777 = vmatprep.subr.mxu0 %v1776
        %v1778 = vand.u32 %v374, 4294901760
        %1779 = vmatpush1.msra.mxu0 %v1778
        %v1780 = vand.u32 %v377, 4294901760
        %1781 = vmatprep.subr.mxu0 %v1780
        %v1782 = vand.u32 %v376, 4294901760
        %1783 = vmatpush1.msra.mxu0 %v1782
        %v1784 = vand.u32 %v379, 4294901760
        %1785 = vmatprep.subr.mxu0 %v1784
        %v1786 = vand.u32 %v378, 4294901760
        %1787 = vmatpush1.msra.mxu0 %v1786
        %v1788 = vand.u32 %v381, 4294901760
        %1789 = vmatprep.subr.mxu0 %v1788
        %v1790 = vand.u32 %v380, 4294901760
        %1791 = vmatpush1.msra.mxu0 %v1790
        %v1792 = vand.u32 %v383, 4294901760
        %1793 = vmatprep.subr.mxu0 %v1792
        %v1794 = vand.u32 %v382, 4294901760
        %1795 = vmatpush1.msra.mxu0 %v1794
        %v1796 = vand.u32 %v385, 4294901760
        %1797 = vmatprep.subr.mxu0 %v1796
        %v1798 = vand.u32 %v384, 4294901760
        %1799 = vmatpush1.msra.mxu0 %v1798
        %v1800 = vand.u32 %v387, 4294901760
        %1801 = vmatprep.subr.mxu0 %v1800
        %v1802 = vand.u32 %v386, 4294901760
        %1803 = vmatpush1.msra.mxu0 %v1802
        %v1804 = vand.u32 %v389, 4294901760
        %1805 = vmatprep.subr.mxu0 %v1804
        %v1806 = vand.u32 %v388, 4294901760
        %1807 = vmatpush1.msra.mxu0 %v1806
        %v1808 = vand.u32 %v391, 4294901760
        %1809 = vmatprep.subr.mxu0 %v1808
        %v1810 = vand.u32 %v390, 4294901760
        %1811 = vmatpush1.msra.mxu0 %v1810
        %v1812 = vand.u32 %v393, 4294901760
        %1813 = vmatprep.subr.mxu0 %v1812
        %v1814 = vand.u32 %v392, 4294901760
        %1815 = vmatpush1.msra.mxu0 %v1814
        %v1816 = vand.u32 %v395, 4294901760
        %1817 = vmatprep.subr.mxu0 %v1816
        %v1818 = vand.u32 %v394, 4294901760
        %1819 = vmatpush1.msra.mxu0 %v1818
        %v1820 = vand.u32 %v267, 4294901760
        %v1821 = vsub.f32 %v267, %v1820
        %v1822 = vand.u32 %v1821, 4294901760
        %v1823 = vsub.f32 %v1821, %v1822
        %v1824 = vand.u32 %v1823, 4294901760
        %1825 = vmatprep.mubr.f32.mxu0 %v1824
        %v1826 = vand.u32 %v266, 4294901760
        %v1827 = vsub.f32 %v266, %v1826
        %v1828 = vand.u32 %v1827, 4294901760
        %v1829 = vsub.f32 %v1827, %v1828
        %v1830 = vand.u32 %v1829, 4294901760
        %1831 = vmatmul.mubr.f32.gmra.mrb[0].mxu0 %v1830
        %v1832 = vpop.f32.mrb[0].mxu0
        %v1833 = vadd.f32 %v1688, %v1832
        %v1834 = vpop.f32.mrb[0].mxu0
        %v1835 = vadd.f32 %v1690, %v1834
        %1836 = vdwg.mxu0
        %v1837 = vand.u32 %v333, 4294901760
        %v1838 = vsub.f32 %v333, %v1837
        %v1839 = vand.u32 %v1838, 4294901760
        %v1840 = vsub.f32 %v1838, %v1839
        %v1841 = vand.u32 %v1840, 4294901760
        %1842 = vmatprep.subr.mxu0 %v1841
        %v1843 = vand.u32 %v332, 4294901760
        %v1844 = vsub.f32 %v332, %v1843
        %v1845 = vand.u32 %v1844, 4294901760
        %v1846 = vsub.f32 %v1844, %v1845
        %v1847 = vand.u32 %v1846, 4294901760
        %1848 = vmatpush1.msra.mxu0 %v1847
        %v1849 = vand.u32 %v335, 4294901760
        %v1850 = vsub.f32 %v335, %v1849
        %v1851 = vand.u32 %v1850, 4294901760
        %v1852 = vsub.f32 %v1850, %v1851
        %v1853 = vand.u32 %v1852, 4294901760
        %1854 = vmatprep.subr.mxu0 %v1853
        %v1855 = vand.u32 %v334, 4294901760
        %v1856 = vsub.f32 %v334, %v1855
        %v1857 = vand.u32 %v1856, 4294901760
        %v1858 = vsub.f32 %v1856, %v1857
        %v1859 = vand.u32 %v1858, 4294901760
        %1860 = vmatpush1.msra.mxu0 %v1859
        %v1861 = vand.u32 %v337, 4294901760
        %v1862 = vsub.f32 %v337, %v1861
        %v1863 = vand.u32 %v1862, 4294901760
        %v1864 = vsub.f32 %v1862, %v1863
        %v1865 = vand.u32 %v1864, 4294901760
        %1866 = vmatprep.subr.mxu0 %v1865
        %v1867 = vand.u32 %v336, 4294901760
        %v1868 = vsub.f32 %v336, %v1867
        %v1869 = vand.u32 %v1868, 4294901760
        %v1870 = vsub.f32 %v1868, %v1869
        %v1871 = vand.u32 %v1870, 4294901760
        %1872 = vmatpush1.msra.mxu0 %v1871
        %v1873 = vand.u32 %v339, 4294901760
        %v1874 = vsub.f32 %v339, %v1873
        %v1875 = vand.u32 %v1874, 4294901760
        %v1876 = vsub.f32 %v1874, %v1875
        %v1877 = vand.u32 %v1876, 4294901760
        %1878 = vmatprep.subr.mxu0 %v1877
        %v1879 = vand.u32 %v338, 4294901760
        %v1880 = vsub.f32 %v338, %v1879
        %v1881 = vand.u32 %v1880, 4294901760
        %v1882 = vsub.f32 %v1880, %v1881
        %v1883 = vand.u32 %v1882, 4294901760
        %1884 = vmatpush1.msra.mxu0 %v1883
        %v1885 = vand.u32 %v341, 4294901760
        %v1886 = vsub.f32 %v341, %v1885
        %v1887 = vand.u32 %v1886, 4294901760
        %v1888 = vsub.f32 %v1886, %v1887
        %v1889 = vand.u32 %v1888, 4294901760
        %1890 = vmatprep.subr.mxu0 %v1889
        %v1891 = vand.u32 %v340, 4294901760
        %v1892 = vsub.f32 %v340, %v1891
        %v1893 = vand.u32 %v1892, 4294901760
        %v1894 = vsub.f32 %v1892, %v1893
        %v1895 = vand.u32 %v1894, 4294901760
        %1896 = vmatpush1.msra.mxu0 %v1895
        %v1897 = vand.u32 %v343, 4294901760
        %v1898 = vsub.f32 %v343, %v1897
        %v1899 = vand.u32 %v1898, 4294901760
        %v1900 = vsub.f32 %v1898, %v1899
        %v1901 = vand.u32 %v1900, 4294901760
        %1902 = vmatprep.subr.mxu0 %v1901
        %v1903 = vand.u32 %v342, 4294901760
        %v1904 = vsub.f32 %v342, %v1903
        %v1905 = vand.u32 %v1904, 4294901760
        %v1906 = vsub.f32 %v1904, %v1905
        %v1907 = vand.u32 %v1906, 4294901760
        %1908 = vmatpush1.msra.mxu0 %v1907
        %v1909 = vand.u32 %v345, 4294901760
        %v1910 = vsub.f32 %v345, %v1909
        %v1911 = vand.u32 %v1910, 4294901760
        %v1912 = vsub.f32 %v1910, %v1911
        %v1913 = vand.u32 %v1912, 4294901760
        %1914 = vmatprep.subr.mxu0 %v1913
        %v1915 = vand.u32 %v344, 4294901760
        %v1916 = vsub.f32 %v344, %v1915
        %v1917 = vand.u32 %v1916, 4294901760
        %v1918 = vsub.f32 %v1916, %v1917
        %v1919 = vand.u32 %v1918, 4294901760
        %1920 = vmatpush1.msra.mxu0 %v1919
        %v1921 = vand.u32 %v347, 4294901760
        %v1922 = vsub.f32 %v347, %v1921
        %v1923 = vand.u32 %v1922, 4294901760
        %v1924 = vsub.f32 %v1922, %v1923
        %v1925 = vand.u32 %v1924, 4294901760
        %1926 = vmatprep.subr.mxu0 %v1925
        %v1927 = vand.u32 %v346, 4294901760
        %v1928 = vsub.f32 %v346, %v1927
        %v1929 = vand.u32 %v1928, 4294901760
        %v1930 = vsub.f32 %v1928, %v1929
        %v1931 = vand.u32 %v1930, 4294901760
        %1932 = vmatpush1.msra.mxu0 %v1931
        %v1933 = vand.u32 %v349, 4294901760
        %v1934 = vsub.f32 %v349, %v1933
        %v1935 = vand.u32 %v1934, 4294901760
        %v1936 = vsub.f32 %v1934, %v1935
        %v1937 = vand.u32 %v1936, 4294901760
        %1938 = vmatprep.subr.mxu0 %v1937
        %v1939 = vand.u32 %v348, 4294901760
        %v1940 = vsub.f32 %v348, %v1939
        %v1941 = vand.u32 %v1940, 4294901760
        %v1942 = vsub.f32 %v1940, %v1941
        %v1943 = vand.u32 %v1942, 4294901760
        %1944 = vmatpush1.msra.mxu0 %v1943
        %v1945 = vand.u32 %v351, 4294901760
        %v1946 = vsub.f32 %v351, %v1945
        %v1947 = vand.u32 %v1946, 4294901760
        %v1948 = vsub.f32 %v1946, %v1947
        %v1949 = vand.u32 %v1948, 4294901760
        %1950 = vmatprep.subr.mxu0 %v1949
        %v1951 = vand.u32 %v350, 4294901760
        %v1952 = vsub.f32 %v350, %v1951
        %v1953 = vand.u32 %v1952, 4294901760
        %v1954 = vsub.f32 %v1952, %v1953
        %v1955 = vand.u32 %v1954, 4294901760
        %1956 = vmatpush1.msra.mxu0 %v1955
        %v1957 = vand.u32 %v353, 4294901760
        %v1958 = vsub.f32 %v353, %v1957
        %v1959 = vand.u32 %v1958, 4294901760
        %v1960 = vsub.f32 %v1958, %v1959
        %v1961 = vand.u32 %v1960, 4294901760
        %1962 = vmatprep.subr.mxu0 %v1961
        %v1963 = vand.u32 %v352, 4294901760
        %v1964 = vsub.f32 %v352, %v1963
        %v1965 = vand.u32 %v1964, 4294901760
        %v1966 = vsub.f32 %v1964, %v1965
        %v1967 = vand.u32 %v1966, 4294901760
        %1968 = vmatpush1.msra.mxu0 %v1967
        %v1969 = vand.u32 %v355, 4294901760
        %v1970 = vsub.f32 %v355, %v1969
        %v1971 = vand.u32 %v1970, 4294901760
        %v1972 = vsub.f32 %v1970, %v1971
        %v1973 = vand.u32 %v1972, 4294901760
        %1974 = vmatprep.subr.mxu0 %v1973
        %v1975 = vand.u32 %v354, 4294901760
        %v1976 = vsub.f32 %v354, %v1975
        %v1977 = vand.u32 %v1976, 4294901760
        %v1978 = vsub.f32 %v1976, %v1977
        %v1979 = vand.u32 %v1978, 4294901760
        %1980 = vmatpush1.msra.mxu0 %v1979
        %v1981 = vand.u32 %v357, 4294901760
        %v1982 = vsub.f32 %v357, %v1981
        %v1983 = vand.u32 %v1982, 4294901760
        %v1984 = vsub.f32 %v1982, %v1983
        %v1985 = vand.u32 %v1984, 4294901760
        %1986 = vmatprep.subr.mxu0 %v1985
        %v1987 = vand.u32 %v356, 4294901760
        %v1988 = vsub.f32 %v356, %v1987
        %v1989 = vand.u32 %v1988, 4294901760
        %v1990 = vsub.f32 %v1988, %v1989
        %v1991 = vand.u32 %v1990, 4294901760
        %1992 = vmatpush1.msra.mxu0 %v1991
        %v1993 = vand.u32 %v359, 4294901760
        %v1994 = vsub.f32 %v359, %v1993
        %v1995 = vand.u32 %v1994, 4294901760
        %v1996 = vsub.f32 %v1994, %v1995
        %v1997 = vand.u32 %v1996, 4294901760
        %1998 = vmatprep.subr.mxu0 %v1997
        %v1999 = vand.u32 %v358, 4294901760
        %v2000 = vsub.f32 %v358, %v1999
        %v2001 = vand.u32 %v2000, 4294901760
        %v2002 = vsub.f32 %v2000, %v2001
        %v2003 = vand.u32 %v2002, 4294901760
        %2004 = vmatpush1.msra.mxu0 %v2003
        %v2005 = vand.u32 %v361, 4294901760
        %v2006 = vsub.f32 %v361, %v2005
        %v2007 = vand.u32 %v2006, 4294901760
        %v2008 = vsub.f32 %v2006, %v2007
        %v2009 = vand.u32 %v2008, 4294901760
        %2010 = vmatprep.subr.mxu0 %v2009
        %v2011 = vand.u32 %v360, 4294901760
        %v2012 = vsub.f32 %v360, %v2011
        %v2013 = vand.u32 %v2012, 4294901760
        %v2014 = vsub.f32 %v2012, %v2013
        %v2015 = vand.u32 %v2014, 4294901760
        %2016 = vmatpush1.msra.mxu0 %v2015
        %v2017 = vand.u32 %v363, 4294901760
        %v2018 = vsub.f32 %v363, %v2017
        %v2019 = vand.u32 %v2018, 4294901760
        %v2020 = vsub.f32 %v2018, %v2019
        %v2021 = vand.u32 %v2020, 4294901760
        %2022 = vmatprep.subr.mxu0 %v2021
        %v2023 = vand.u32 %v362, 4294901760
        %v2024 = vsub.f32 %v362, %v2023
        %v2025 = vand.u32 %v2024, 4294901760
        %v2026 = vsub.f32 %v2024, %v2025
        %v2027 = vand.u32 %v2026, 4294901760
        %2028 = vmatpush1.msra.mxu0 %v2027
        %v2029 = vand.u32 %v365, 4294901760
        %v2030 = vsub.f32 %v365, %v2029
        %v2031 = vand.u32 %v2030, 4294901760
        %v2032 = vsub.f32 %v2030, %v2031
        %v2033 = vand.u32 %v2032, 4294901760
        %2034 = vmatprep.subr.mxu0 %v2033
        %v2035 = vand.u32 %v364, 4294901760
        %v2036 = vsub.f32 %v364, %v2035
        %v2037 = vand.u32 %v2036, 4294901760
        %v2038 = vsub.f32 %v2036, %v2037
        %v2039 = vand.u32 %v2038, 4294901760
        %2040 = vmatpush1.msra.mxu0 %v2039
        %v2041 = vand.u32 %v367, 4294901760
        %v2042 = vsub.f32 %v367, %v2041
        %v2043 = vand.u32 %v2042, 4294901760
        %v2044 = vsub.f32 %v2042, %v2043
        %v2045 = vand.u32 %v2044, 4294901760
        %2046 = vmatprep.subr.mxu0 %v2045
        %v2047 = vand.u32 %v366, 4294901760
        %v2048 = vsub.f32 %v366, %v2047
        %v2049 = vand.u32 %v2048, 4294901760
        %v2050 = vsub.f32 %v2048, %v2049
        %v2051 = vand.u32 %v2050, 4294901760
        %2052 = vmatpush1.msra.mxu0 %v2051
        %v2053 = vand.u32 %v369, 4294901760
        %v2054 = vsub.f32 %v369, %v2053
        %v2055 = vand.u32 %v2054, 4294901760
        %v2056 = vsub.f32 %v2054, %v2055
        %v2057 = vand.u32 %v2056, 4294901760
        %2058 = vmatprep.subr.mxu0 %v2057
        %v2059 = vand.u32 %v368, 4294901760
        %v2060 = vsub.f32 %v368, %v2059
        %v2061 = vand.u32 %v2060, 4294901760
        %v2062 = vsub.f32 %v2060, %v2061
        %v2063 = vand.u32 %v2062, 4294901760
        %2064 = vmatpush1.msra.mxu0 %v2063
        %v2065 = vand.u32 %v371, 4294901760
        %v2066 = vsub.f32 %v371, %v2065
        %v2067 = vand.u32 %v2066, 4294901760
        %v2068 = vsub.f32 %v2066, %v2067
        %v2069 = vand.u32 %v2068, 4294901760
        %2070 = vmatprep.subr.mxu0 %v2069
        %v2071 = vand.u32 %v370, 4294901760
        %v2072 = vsub.f32 %v370, %v2071
        %v2073 = vand.u32 %v2072, 4294901760
        %v2074 = vsub.f32 %v2072, %v2073
        %v2075 = vand.u32 %v2074, 4294901760
        %2076 = vmatpush1.msra.mxu0 %v2075
        %v2077 = vand.u32 %v373, 4294901760
        %v2078 = vsub.f32 %v373, %v2077
        %v2079 = vand.u32 %v2078, 4294901760
        %v2080 = vsub.f32 %v2078, %v2079
        %v2081 = vand.u32 %v2080, 4294901760
        %2082 = vmatprep.subr.mxu0 %v2081
        %v2083 = vand.u32 %v372, 4294901760
        %v2084 = vsub.f32 %v372, %v2083
        %v2085 = vand.u32 %v2084, 4294901760
        %v2086 = vsub.f32 %v2084, %v2085
        %v2087 = vand.u32 %v2086, 4294901760
        %2088 = vmatpush1.msra.mxu0 %v2087
        %v2089 = vand.u32 %v375, 4294901760
        %v2090 = vsub.f32 %v375, %v2089
        %v2091 = vand.u32 %v2090, 4294901760
        %v2092 = vsub.f32 %v2090, %v2091
        %v2093 = vand.u32 %v2092, 4294901760
        %2094 = vmatprep.subr.mxu0 %v2093
        %v2095 = vand.u32 %v374, 4294901760
        %v2096 = vsub.f32 %v374, %v2095
        %v2097 = vand.u32 %v2096, 4294901760
        %v2098 = vsub.f32 %v2096, %v2097
        %v2099 = vand.u32 %v2098, 4294901760
        %2100 = vmatpush1.msra.mxu0 %v2099
        %v2101 = vand.u32 %v377, 4294901760
        %v2102 = vsub.f32 %v377, %v2101
        %v2103 = vand.u32 %v2102, 4294901760
        %v2104 = vsub.f32 %v2102, %v2103
        %v2105 = vand.u32 %v2104, 4294901760
        %2106 = vmatprep.subr.mxu0 %v2105
        %v2107 = vand.u32 %v376, 4294901760
        %v2108 = vsub.f32 %v376, %v2107
        %v2109 = vand.u32 %v2108, 4294901760
        %v2110 = vsub.f32 %v2108, %v2109
        %v2111 = vand.u32 %v2110, 4294901760
        %2112 = vmatpush1.msra.mxu0 %v2111
        %v2113 = vand.u32 %v379, 4294901760
        %v2114 = vsub.f32 %v379, %v2113
        %v2115 = vand.u32 %v2114, 4294901760
        %v2116 = vsub.f32 %v2114, %v2115
        %v2117 = vand.u32 %v2116, 4294901760
        %2118 = vmatprep.subr.mxu0 %v2117
        %v2119 = vand.u32 %v378, 4294901760
        %v2120 = vsub.f32 %v378, %v2119
        %v2121 = vand.u32 %v2120, 4294901760
        %v2122 = vsub.f32 %v2120, %v2121
        %v2123 = vand.u32 %v2122, 4294901760
        %2124 = vmatpush1.msra.mxu0 %v2123
        %v2125 = vand.u32 %v381, 4294901760
        %v2126 = vsub.f32 %v381, %v2125
        %v2127 = vand.u32 %v2126, 4294901760
        %v2128 = vsub.f32 %v2126, %v2127
        %v2129 = vand.u32 %v2128, 4294901760
        %2130 = vmatprep.subr.mxu0 %v2129
        %v2131 = vand.u32 %v380, 4294901760
        %v2132 = vsub.f32 %v380, %v2131
        %v2133 = vand.u32 %v2132, 4294901760
        %v2134 = vsub.f32 %v2132, %v2133
        %v2135 = vand.u32 %v2134, 4294901760
        %2136 = vmatpush1.msra.mxu0 %v2135
        %v2137 = vand.u32 %v383, 4294901760
        %v2138 = vsub.f32 %v383, %v2137
        %v2139 = vand.u32 %v2138, 4294901760
        %v2140 = vsub.f32 %v2138, %v2139
        %v2141 = vand.u32 %v2140, 4294901760
        %2142 = vmatprep.subr.mxu0 %v2141
        %v2143 = vand.u32 %v382, 4294901760
        %v2144 = vsub.f32 %v382, %v2143
        %v2145 = vand.u32 %v2144, 4294901760
        %v2146 = vsub.f32 %v2144, %v2145
        %v2147 = vand.u32 %v2146, 4294901760
        %2148 = vmatpush1.msra.mxu0 %v2147
        %v2149 = vand.u32 %v385, 4294901760
        %v2150 = vsub.f32 %v385, %v2149
        %v2151 = vand.u32 %v2150, 4294901760
        %v2152 = vsub.f32 %v2150, %v2151
        %v2153 = vand.u32 %v2152, 4294901760
        %2154 = vmatprep.subr.mxu0 %v2153
        %v2155 = vand.u32 %v384, 4294901760
        %v2156 = vsub.f32 %v384, %v2155
        %v2157 = vand.u32 %v2156, 4294901760
        %v2158 = vsub.f32 %v2156, %v2157
        %v2159 = vand.u32 %v2158, 4294901760
        %2160 = vmatpush1.msra.mxu0 %v2159
        %v2161 = vand.u32 %v387, 4294901760
        %v2162 = vsub.f32 %v387, %v2161
        %v2163 = vand.u32 %v2162, 4294901760
        %v2164 = vsub.f32 %v2162, %v2163
        %v2165 = vand.u32 %v2164, 4294901760
        %2166 = vmatprep.subr.mxu0 %v2165
        %v2167 = vand.u32 %v386, 4294901760
        %v2168 = vsub.f32 %v386, %v2167
        %v2169 = vand.u32 %v2168, 4294901760
        %v2170 = vsub.f32 %v2168, %v2169
        %v2171 = vand.u32 %v2170, 4294901760
        %2172 = vmatpush1.msra.mxu0 %v2171
        %v2173 = vand.u32 %v389, 4294901760
        %v2174 = vsub.f32 %v389, %v2173
        %v2175 = vand.u32 %v2174, 4294901760
        %v2176 = vsub.f32 %v2174, %v2175
        %v2177 = vand.u32 %v2176, 4294901760
        %2178 = vmatprep.subr.mxu0 %v2177
        %v2179 = vand.u32 %v388, 4294901760
        %v2180 = vsub.f32 %v388, %v2179
        %v2181 = vand.u32 %v2180, 4294901760
        %v2182 = vsub.f32 %v2180, %v2181
        %v2183 = vand.u32 %v2182, 4294901760
        %2184 = vmatpush1.msra.mxu0 %v2183
        %v2185 = vand.u32 %v391, 4294901760
        %v2186 = vsub.f32 %v391, %v2185
        %v2187 = vand.u32 %v2186, 4294901760
        %v2188 = vsub.f32 %v2186, %v2187
        %v2189 = vand.u32 %v2188, 4294901760
        %2190 = vmatprep.subr.mxu0 %v2189
        %v2191 = vand.u32 %v390, 4294901760
        %v2192 = vsub.f32 %v390, %v2191
        %v2193 = vand.u32 %v2192, 4294901760
        %v2194 = vsub.f32 %v2192, %v2193
        %v2195 = vand.u32 %v2194, 4294901760
        %2196 = vmatpush1.msra.mxu0 %v2195
        %v2197 = vand.u32 %v393, 4294901760
        %v2198 = vsub.f32 %v393, %v2197
        %v2199 = vand.u32 %v2198, 4294901760
        %v2200 = vsub.f32 %v2198, %v2199
        %v2201 = vand.u32 %v2200, 4294901760
        %2202 = vmatprep.subr.mxu0 %v2201
        %v2203 = vand.u32 %v392, 4294901760
        %v2204 = vsub.f32 %v392, %v2203
        %v2205 = vand.u32 %v2204, 4294901760
        %v2206 = vsub.f32 %v2204, %v2205
        %v2207 = vand.u32 %v2206, 4294901760
        %2208 = vmatpush1.msra.mxu0 %v2207
        %v2209 = vand.u32 %v395, 4294901760
        %v2210 = vsub.f32 %v395, %v2209
        %v2211 = vand.u32 %v2210, 4294901760
        %v2212 = vsub.f32 %v2210, %v2211
        %v2213 = vand.u32 %v2212, 4294901760
        %2214 = vmatprep.subr.mxu0 %v2213
        %v2215 = vand.u32 %v394, 4294901760
        %v2216 = vsub.f32 %v394, %v2215
        %v2217 = vand.u32 %v2216, 4294901760
        %v2218 = vsub.f32 %v2216, %v2217
        %v2219 = vand.u32 %v2218, 4294901760
        %2220 = vmatpush1.msra.mxu0 %v2219
        %v2221 = vand.u32 %v267, 4294901760
        %2222 = vmatprep.mubr.f32.mxu0 %v2221
        %v2223 = vand.u32 %v266, 4294901760
        %2224 = vmatmul.mubr.f32.gmra.mrb[0].mxu0 %v2223
        %v2225 = vpop.f32.mrb[0].mxu0
        %v2226 = vadd.f32 %v1833, %v2225
        %v2227 = vpop.f32.mrb[0].mxu0
        %v2228 = vadd.f32 %v1835, %v2227
        %2229 = vdwg.mxu0
        %v2230 = vand.u32 %v333, 4294901760
        %v2231 = vsub.f32 %v333, %v2230
        %2232 = vmatprep.subr.mxu0 %v2231
        %v2233 = vand.u32 %v332, 4294901760
        %v2234 = vsub.f32 %v332, %v2233
        %2235 = vmatpush1.msra.mxu0 %v2234
        %v2236 = vand.u32 %v335, 4294901760
        %v2237 = vsub.f32 %v335, %v2236
        %2238 = vmatprep.subr.mxu0 %v2237
        %v2239 = vand.u32 %v334, 4294901760
        %v2240 = vsub.f32 %v334, %v2239
        %2241 = vmatpush1.msra.mxu0 %v2240
        %v2242 = vand.u32 %v337, 4294901760
        %v2243 = vsub.f32 %v337, %v2242
        %2244 = vmatprep.subr.mxu0 %v2243
        %v2245 = vand.u32 %v336, 4294901760
        %v2246 = vsub.f32 %v336, %v2245
        %2247 = vmatpush1.msra.mxu0 %v2246
        %v2248 = vand.u32 %v339, 4294901760
        %v2249 = vsub.f32 %v339, %v2248
        %2250 = vmatprep.subr.mxu0 %v2249
        %v2251 = vand.u32 %v338, 4294901760
        %v2252 = vsub.f32 %v338, %v2251
        %2253 = vmatpush1.msra.mxu0 %v2252
        %v2254 = vand.u32 %v341, 4294901760
        %v2255 = vsub.f32 %v341, %v2254
        %2256 = vmatprep.subr.mxu0 %v2255
        %v2257 = vand.u32 %v340, 4294901760
        %v2258 = vsub.f32 %v340, %v2257
        %2259 = vmatpush1.msra.mxu0 %v2258
        %v2260 = vand.u32 %v343, 4294901760
        %v2261 = vsub.f32 %v343, %v2260
        %2262 = vmatprep.subr.mxu0 %v2261
        %v2263 = vand.u32 %v342, 4294901760
        %v2264 = vsub.f32 %v342, %v2263
        %2265 = vmatpush1.msra.mxu0 %v2264
        %v2266 = vand.u32 %v345, 4294901760
        %v2267 = vsub.f32 %v345, %v2266
        %2268 = vmatprep.subr.mxu0 %v2267
        %v2269 = vand.u32 %v344, 4294901760
        %v2270 = vsub.f32 %v344, %v2269
        %2271 = vmatpush1.msra.mxu0 %v2270
        %v2272 = vand.u32 %v347, 4294901760
        %v2273 = vsub.f32 %v347, %v2272
        %2274 = vmatprep.subr.mxu0 %v2273
        %v2275 = vand.u32 %v346, 4294901760
        %v2276 = vsub.f32 %v346, %v2275
        %2277 = vmatpush1.msra.mxu0 %v2276
        %v2278 = vand.u32 %v349, 4294901760
        %v2279 = vsub.f32 %v349, %v2278
        %2280 = vmatprep.subr.mxu0 %v2279
        %v2281 = vand.u32 %v348, 4294901760
        %v2282 = vsub.f32 %v348, %v2281
        %2283 = vmatpush1.msra.mxu0 %v2282
        %v2284 = vand.u32 %v351, 4294901760
        %v2285 = vsub.f32 %v351, %v2284
        %2286 = vmatprep.subr.mxu0 %v2285
        %v2287 = vand.u32 %v350, 4294901760
        %v2288 = vsub.f32 %v350, %v2287
        %2289 = vmatpush1.msra.mxu0 %v2288
        %v2290 = vand.u32 %v353, 4294901760
        %v2291 = vsub.f32 %v353, %v2290
        %2292 = vmatprep.subr.mxu0 %v2291
        %v2293 = vand.u32 %v352, 4294901760
        %v2294 = vsub.f32 %v352, %v2293
        %2295 = vmatpush1.msra.mxu0 %v2294
        %v2296 = vand.u32 %v355, 4294901760
        %v2297 = vsub.f32 %v355, %v2296
        %2298 = vmatprep.subr.mxu0 %v2297
        %v2299 = vand.u32 %v354, 4294901760
        %v2300 = vsub.f32 %v354, %v2299
        %2301 = vmatpush1.msra.mxu0 %v2300
        %v2302 = vand.u32 %v357, 4294901760
        %v2303 = vsub.f32 %v357, %v2302
        %2304 = vmatprep.subr.mxu0 %v2303
        %v2305 = vand.u32 %v356, 4294901760
        %v2306 = vsub.f32 %v356, %v2305
        %2307 = vmatpush1.msra.mxu0 %v2306
        %v2308 = vand.u32 %v359, 4294901760
        %v2309 = vsub.f32 %v359, %v2308
        %2310 = vmatprep.subr.mxu0 %v2309
        %v2311 = vand.u32 %v358, 4294901760
        %v2312 = vsub.f32 %v358, %v2311
        %2313 = vmatpush1.msra.mxu0 %v2312
        %v2314 = vand.u32 %v361, 4294901760
        %v2315 = vsub.f32 %v361, %v2314
        %2316 = vmatprep.subr.mxu0 %v2315
        %v2317 = vand.u32 %v360, 4294901760
        %v2318 = vsub.f32 %v360, %v2317
        %2319 = vmatpush1.msra.mxu0 %v2318
        %v2320 = vand.u32 %v363, 4294901760
        %v2321 = vsub.f32 %v363, %v2320
        %2322 = vmatprep.subr.mxu0 %v2321
        %v2323 = vand.u32 %v362, 4294901760
        %v2324 = vsub.f32 %v362, %v2323
        %2325 = vmatpush1.msra.mxu0 %v2324
        %v2326 = vand.u32 %v365, 4294901760
        %v2327 = vsub.f32 %v365, %v2326
        %2328 = vmatprep.subr.mxu0 %v2327
        %v2329 = vand.u32 %v364, 4294901760
        %v2330 = vsub.f32 %v364, %v2329
        %2331 = vmatpush1.msra.mxu0 %v2330
        %v2332 = vand.u32 %v367, 4294901760
        %v2333 = vsub.f32 %v367, %v2332
        %2334 = vmatprep.subr.mxu0 %v2333
        %v2335 = vand.u32 %v366, 4294901760
        %v2336 = vsub.f32 %v366, %v2335
        %2337 = vmatpush1.msra.mxu0 %v2336
        %v2338 = vand.u32 %v369, 4294901760
        %v2339 = vsub.f32 %v369, %v2338
        %2340 = vmatprep.subr.mxu0 %v2339
        %v2341 = vand.u32 %v368, 4294901760
        %v2342 = vsub.f32 %v368, %v2341
        %2343 = vmatpush1.msra.mxu0 %v2342
        %v2344 = vand.u32 %v371, 4294901760
        %v2345 = vsub.f32 %v371, %v2344
        %2346 = vmatprep.subr.mxu0 %v2345
        %v2347 = vand.u32 %v370, 4294901760
        %v2348 = vsub.f32 %v370, %v2347
        %2349 = vmatpush1.msra.mxu0 %v2348
        %v2350 = vand.u32 %v373, 4294901760
        %v2351 = vsub.f32 %v373, %v2350
        %2352 = vmatprep.subr.mxu0 %v2351
        %v2353 = vand.u32 %v372, 4294901760
        %v2354 = vsub.f32 %v372, %v2353
        %2355 = vmatpush1.msra.mxu0 %v2354
        %v2356 = vand.u32 %v375, 4294901760
        %v2357 = vsub.f32 %v375, %v2356
        %2358 = vmatprep.subr.mxu0 %v2357
        %v2359 = vand.u32 %v374, 4294901760
        %v2360 = vsub.f32 %v374, %v2359
        %2361 = vmatpush1.msra.mxu0 %v2360
        %v2362 = vand.u32 %v377, 4294901760
        %v2363 = vsub.f32 %v377, %v2362
        %2364 = vmatprep.subr.mxu0 %v2363
        %v2365 = vand.u32 %v376, 4294901760
        %v2366 = vsub.f32 %v376, %v2365
        %2367 = vmatpush1.msra.mxu0 %v2366
        %v2368 = vand.u32 %v379, 4294901760
        %v2369 = vsub.f32 %v379, %v2368
        %2370 = vmatprep.subr.mxu0 %v2369
        %v2371 = vand.u32 %v378, 4294901760
        %v2372 = vsub.f32 %v378, %v2371
        %2373 = vmatpush1.msra.mxu0 %v2372
        %v2374 = vand.u32 %v381, 4294901760
        %v2375 = vsub.f32 %v381, %v2374
        %2376 = vmatprep.subr.mxu0 %v2375
        %v2377 = vand.u32 %v380, 4294901760
        %v2378 = vsub.f32 %v380, %v2377
        %2379 = vmatpush1.msra.mxu0 %v2378
        %v2380 = vand.u32 %v383, 4294901760
        %v2381 = vsub.f32 %v383, %v2380
        %2382 = vmatprep.subr.mxu0 %v2381
        %v2383 = vand.u32 %v382, 4294901760
        %v2384 = vsub.f32 %v382, %v2383
        %2385 = vmatpush1.msra.mxu0 %v2384
        %v2386 = vand.u32 %v385, 4294901760
        %v2387 = vsub.f32 %v385, %v2386
        %2388 = vmatprep.subr.mxu0 %v2387
        %v2389 = vand.u32 %v384, 4294901760
        %v2390 = vsub.f32 %v384, %v2389
        %2391 = vmatpush1.msra.mxu0 %v2390
        %v2392 = vand.u32 %v387, 4294901760
        %v2393 = vsub.f32 %v387, %v2392
        %2394 = vmatprep.subr.mxu0 %v2393
        %v2395 = vand.u32 %v386, 4294901760
        %v2396 = vsub.f32 %v386, %v2395
        %2397 = vmatpush1.msra.mxu0 %v2396
        %v2398 = vand.u32 %v389, 4294901760
        %v2399 = vsub.f32 %v389, %v2398
        %2400 = vmatprep.subr.mxu0 %v2399
        %v2401 = vand.u32 %v388, 4294901760
        %v2402 = vsub.f32 %v388, %v2401
        %2403 = vmatpush1.msra.mxu0 %v2402
        %v2404 = vand.u32 %v391, 4294901760
        %v2405 = vsub.f32 %v391, %v2404
        %2406 = vmatprep.subr.mxu0 %v2405
        %v2407 = vand.u32 %v390, 4294901760
        %v2408 = vsub.f32 %v390, %v2407
        %2409 = vmatpush1.msra.mxu0 %v2408
        %v2410 = vand.u32 %v393, 4294901760
        %v2411 = vsub.f32 %v393, %v2410
        %2412 = vmatprep.subr.mxu0 %v2411
        %v2413 = vand.u32 %v392, 4294901760
        %v2414 = vsub.f32 %v392, %v2413
        %2415 = vmatpush1.msra.mxu0 %v2414
        %v2416 = vand.u32 %v395, 4294901760
        %v2417 = vsub.f32 %v395, %v2416
        %2418 = vmatprep.subr.mxu0 %v2417
        %v2419 = vand.u32 %v394, 4294901760
        %v2420 = vsub.f32 %v394, %v2419
        %2421 = vmatpush1.msra.mxu0 %v2420
        %v2422 = vand.u32 %v267, 4294901760
        %v2423 = vsub.f32 %v267, %v2422
        %2424 = vmatprep.mubr.f32.mxu0 %v2423
        %v2425 = vand.u32 %v266, 4294901760
        %v2426 = vsub.f32 %v266, %v2425
        %2427 = vmatmul.mubr.f32.gmra.mrb[0].mxu0 %v2426
        %v2428 = vpop.f32.mrb[0].mxu0
        %v2429 = vadd.f32 %v2226, %v2428
        %v2430 = vpop.f32.mrb[0].mxu0
        %v2431 = vadd.f32 %v2228, %v2430
        %2432 = vdwg.mxu0
        %v2433 = vand.u32 %v333, 4294901760
        %2434 = vmatprep.subr.mxu0 %v2433
        %v2435 = vand.u32 %v332, 4294901760
        %2436 = vmatpush1.msra.mxu0 %v2435
        %v2437 = vand.u32 %v335, 4294901760
        %2438 = vmatprep.subr.mxu0 %v2437
        %v2439 = vand.u32 %v334, 4294901760
        %2440 = vmatpush1.msra.mxu0 %v2439
        %v2441 = vand.u32 %v337, 4294901760
        %2442 = vmatprep.subr.mxu0 %v2441
        %v2443 = vand.u32 %v336, 4294901760
        %2444 = vmatpush1.msra.mxu0 %v2443
        %v2445 = vand.u32 %v339, 4294901760
        %2446 = vmatprep.subr.mxu0 %v2445
        %v2447 = vand.u32 %v338, 4294901760
        %2448 = vmatpush1.msra.mxu0 %v2447
        %v2449 = vand.u32 %v341, 4294901760
        %2450 = vmatprep.subr.mxu0 %v2449
        %v2451 = vand.u32 %v340, 4294901760
        %2452 = vmatpush1.msra.mxu0 %v2451
        %v2453 = vand.u32 %v343, 4294901760
        %2454 = vmatprep.subr.mxu0 %v2453
        %v2455 = vand.u32 %v342, 4294901760
        %2456 = vmatpush1.msra.mxu0 %v2455
        %v2457 = vand.u32 %v345, 4294901760
        %2458 = vmatprep.subr.mxu0 %v2457
        %v2459 = vand.u32 %v344, 4294901760
        %2460 = vmatpush1.msra.mxu0 %v2459
        %v2461 = vand.u32 %v347, 4294901760
        %2462 = vmatprep.subr.mxu0 %v2461
        %v2463 = vand.u32 %v346, 4294901760
        %2464 = vmatpush1.msra.mxu0 %v2463
        %v2465 = vand.u32 %v349, 4294901760
        %2466 = vmatprep.subr.mxu0 %v2465
        %v2467 = vand.u32 %v348, 4294901760
        %2468 = vmatpush1.msra.mxu0 %v2467
        %v2469 = vand.u32 %v351, 4294901760
        %2470 = vmatprep.subr.mxu0 %v2469
        %v2471 = vand.u32 %v350, 4294901760
        %2472 = vmatpush1.msra.mxu0 %v2471
        %v2473 = vand.u32 %v353, 4294901760
        %2474 = vmatprep.subr.mxu0 %v2473
        %v2475 = vand.u32 %v352, 4294901760
        %2476 = vmatpush1.msra.mxu0 %v2475
        %v2477 = vand.u32 %v355, 4294901760
        %2478 = vmatprep.subr.mxu0 %v2477
        %v2479 = vand.u32 %v354, 4294901760
        %2480 = vmatpush1.msra.mxu0 %v2479
        %v2481 = vand.u32 %v357, 4294901760
        %2482 = vmatprep.subr.mxu0 %v2481
        %v2483 = vand.u32 %v356, 4294901760
        %2484 = vmatpush1.msra.mxu0 %v2483
        %v2485 = vand.u32 %v359, 4294901760
        %2486 = vmatprep.subr.mxu0 %v2485
        %v2487 = vand.u32 %v358, 4294901760
        %2488 = vmatpush1.msra.mxu0 %v2487
        %v2489 = vand.u32 %v361, 4294901760
        %2490 = vmatprep.subr.mxu0 %v2489
        %v2491 = vand.u32 %v360, 4294901760
        %2492 = vmatpush1.msra.mxu0 %v2491
        %v2493 = vand.u32 %v363, 4294901760
        %2494 = vmatprep.subr.mxu0 %v2493
        %v2495 = vand.u32 %v362, 4294901760
        %2496 = vmatpush1.msra.mxu0 %v2495
        %v2497 = vand.u32 %v365, 4294901760
        %2498 = vmatprep.subr.mxu0 %v2497
        %v2499 = vand.u32 %v364, 4294901760
        %2500 = vmatpush1.msra.mxu0 %v2499
        %v2501 = vand.u32 %v367, 4294901760
        %2502 = vmatprep.subr.mxu0 %v2501
        %v2503 = vand.u32 %v366, 4294901760
        %2504 = vmatpush1.msra.mxu0 %v2503
        %v2505 = vand.u32 %v369, 4294901760
        %2506 = vmatprep.subr.mxu0 %v2505
        %v2507 = vand.u32 %v368, 4294901760
        %2508 = vmatpush1.msra.mxu0 %v2507
        %v2509 = vand.u32 %v371, 4294901760
        %2510 = vmatprep.subr.mxu0 %v2509
        %v2511 = vand.u32 %v370, 4294901760
        %2512 = vmatpush1.msra.mxu0 %v2511
        %v2513 = vand.u32 %v373, 4294901760
        %2514 = vmatprep.subr.mxu0 %v2513
        %v2515 = vand.u32 %v372, 4294901760
        %2516 = vmatpush1.msra.mxu0 %v2515
        %v2517 = vand.u32 %v375, 4294901760
        %2518 = vmatprep.subr.mxu0 %v2517
        %v2519 = vand.u32 %v374, 4294901760
        %2520 = vmatpush1.msra.mxu0 %v2519
        %v2521 = vand.u32 %v377, 4294901760
        %2522 = vmatprep.subr.mxu0 %v2521
        %v2523 = vand.u32 %v376, 4294901760
        %2524 = vmatpush1.msra.mxu0 %v2523
        %v2525 = vand.u32 %v379, 4294901760
        %2526 = vmatprep.subr.mxu0 %v2525
        %v2527 = vand.u32 %v378, 4294901760
        %2528 = vmatpush1.msra.mxu0 %v2527
        %v2529 = vand.u32 %v381, 4294901760
        %2530 = vmatprep.subr.mxu0 %v2529
        %v2531 = vand.u32 %v380, 4294901760
        %2532 = vmatpush1.msra.mxu0 %v2531
        %v2533 = vand.u32 %v383, 4294901760
        %2534 = vmatprep.subr.mxu0 %v2533
        %v2535 = vand.u32 %v382, 4294901760
        %2536 = vmatpush1.msra.mxu0 %v2535
        %v2537 = vand.u32 %v385, 4294901760
        %2538 = vmatprep.subr.mxu0 %v2537
        %v2539 = vand.u32 %v384, 4294901760
        %2540 = vmatpush1.msra.mxu0 %v2539
        %v2541 = vand.u32 %v387, 4294901760
        %2542 = vmatprep.subr.mxu0 %v2541
        %v2543 = vand.u32 %v386, 4294901760
        %2544 = vmatpush1.msra.mxu0 %v2543
        %v2545 = vand.u32 %v389, 4294901760
        %2546 = vmatprep.subr.mxu0 %v2545
        %v2547 = vand.u32 %v388, 4294901760
        %2548 = vmatpush1.msra.mxu0 %v2547
        %v2549 = vand.u32 %v391, 4294901760
        %2550 = vmatprep.subr.mxu0 %v2549
        %v2551 = vand.u32 %v390, 4294901760
        %2552 = vmatpush1.msra.mxu0 %v2551
        %v2553 = vand.u32 %v393, 4294901760
        %2554 = vmatprep.subr.mxu0 %v2553
        %v2555 = vand.u32 %v392, 4294901760
        %2556 = vmatpush1.msra.mxu0 %v2555
        %v2557 = vand.u32 %v395, 4294901760
        %2558 = vmatprep.subr.mxu0 %v2557
        %v2559 = vand.u32 %v394, 4294901760
        %2560 = vmatpush1.msra.mxu0 %v2559
        %v2561 = vand.u32 %v267, 4294901760
        %v2562 = vsub.f32 %v267, %v2561
        %v2563 = vand.u32 %v2562, 4294901760
        %2564 = vmatprep.mubr.f32.mxu0 %v2563
        %v2565 = vand.u32 %v266, 4294901760
        %v2566 = vsub.f32 %v266, %v2565
        %v2567 = vand.u32 %v2566, 4294901760
        %2568 = vmatmul.mubr.f32.gmra.mrb[0].mxu0 %v2567
        %v2569 = vpop.f32.mrb[0].mxu0
        %v2570 = vadd.f32 %v2429, %v2569
        %v2571 = vpop.f32.mrb[0].mxu0
        %v2572 = vadd.f32 %v2431, %v2571
        %2573 = vdwg.mxu0
        %v2574 = vand.u32 %v333, 4294901760
        %v2575 = vsub.f32 %v333, %v2574
        %v2576 = vand.u32 %v2575, 4294901760
        %2577 = vmatprep.subr.mxu0 %v2576
        %v2578 = vand.u32 %v332, 4294901760
        %v2579 = vsub.f32 %v332, %v2578
        %v2580 = vand.u32 %v2579, 4294901760
        %2581 = vmatpush1.msra.mxu0 %v2580
        %v2582 = vand.u32 %v335, 4294901760
        %v2583 = vsub.f32 %v335, %v2582
        %v2584 = vand.u32 %v2583, 4294901760
        %2585 = vmatprep.subr.mxu0 %v2584
        %v2586 = vand.u32 %v334, 4294901760
        %v2587 = vsub.f32 %v334, %v2586
        %v2588 = vand.u32 %v2587, 4294901760
        %2589 = vmatpush1.msra.mxu0 %v2588
        %v2590 = vand.u32 %v337, 4294901760
        %v2591 = vsub.f32 %v337, %v2590
        %v2592 = vand.u32 %v2591, 4294901760
        %2593 = vmatprep.subr.mxu0 %v2592
        %v2594 = vand.u32 %v336, 4294901760
        %v2595 = vsub.f32 %v336, %v2594
        %v2596 = vand.u32 %v2595, 4294901760
        %2597 = vmatpush1.msra.mxu0 %v2596
        %v2598 = vand.u32 %v339, 4294901760
        %v2599 = vsub.f32 %v339, %v2598
        %v2600 = vand.u32 %v2599, 4294901760
        %2601 = vmatprep.subr.mxu0 %v2600
        %v2602 = vand.u32 %v338, 4294901760
        %v2603 = vsub.f32 %v338, %v2602
        %v2604 = vand.u32 %v2603, 4294901760
        %2605 = vmatpush1.msra.mxu0 %v2604
        %v2606 = vand.u32 %v341, 4294901760
        %v2607 = vsub.f32 %v341, %v2606
        %v2608 = vand.u32 %v2607, 4294901760
        %2609 = vmatprep.subr.mxu0 %v2608
        %v2610 = vand.u32 %v340, 4294901760
        %v2611 = vsub.f32 %v340, %v2610
        %v2612 = vand.u32 %v2611, 4294901760
        %2613 = vmatpush1.msra.mxu0 %v2612
        %v2614 = vand.u32 %v343, 4294901760
        %v2615 = vsub.f32 %v343, %v2614
        %v2616 = vand.u32 %v2615, 4294901760
        %2617 = vmatprep.subr.mxu0 %v2616
        %v2618 = vand.u32 %v342, 4294901760
        %v2619 = vsub.f32 %v342, %v2618
        %v2620 = vand.u32 %v2619, 4294901760
        %2621 = vmatpush1.msra.mxu0 %v2620
        %v2622 = vand.u32 %v345, 4294901760
        %v2623 = vsub.f32 %v345, %v2622
        %v2624 = vand.u32 %v2623, 4294901760
        %2625 = vmatprep.subr.mxu0 %v2624
        %v2626 = vand.u32 %v344, 4294901760
        %v2627 = vsub.f32 %v344, %v2626
        %v2628 = vand.u32 %v2627, 4294901760
        %2629 = vmatpush1.msra.mxu0 %v2628
        %v2630 = vand.u32 %v347, 4294901760
        %v2631 = vsub.f32 %v347, %v2630
        %v2632 = vand.u32 %v2631, 4294901760
        %2633 = vmatprep.subr.mxu0 %v2632
        %v2634 = vand.u32 %v346, 4294901760
        %v2635 = vsub.f32 %v346, %v2634
        %v2636 = vand.u32 %v2635, 4294901760
        %2637 = vmatpush1.msra.mxu0 %v2636
        %v2638 = vand.u32 %v349, 4294901760
        %v2639 = vsub.f32 %v349, %v2638
        %v2640 = vand.u32 %v2639, 4294901760
        %2641 = vmatprep.subr.mxu0 %v2640
        %v2642 = vand.u32 %v348, 4294901760
        %v2643 = vsub.f32 %v348, %v2642
        %v2644 = vand.u32 %v2643, 4294901760
        %2645 = vmatpush1.msra.mxu0 %v2644
        %v2646 = vand.u32 %v351, 4294901760
        %v2647 = vsub.f32 %v351, %v2646
        %v2648 = vand.u32 %v2647, 4294901760
        %2649 = vmatprep.subr.mxu0 %v2648
        %v2650 = vand.u32 %v350, 4294901760
        %v2651 = vsub.f32 %v350, %v2650
        %v2652 = vand.u32 %v2651, 4294901760
        %2653 = vmatpush1.msra.mxu0 %v2652
        %v2654 = vand.u32 %v353, 4294901760
        %v2655 = vsub.f32 %v353, %v2654
        %v2656 = vand.u32 %v2655, 4294901760
        %2657 = vmatprep.subr.mxu0 %v2656
        %v2658 = vand.u32 %v352, 4294901760
        %v2659 = vsub.f32 %v352, %v2658
        %v2660 = vand.u32 %v2659, 4294901760
        %2661 = vmatpush1.msra.mxu0 %v2660
        %v2662 = vand.u32 %v355, 4294901760
        %v2663 = vsub.f32 %v355, %v2662
        %v2664 = vand.u32 %v2663, 4294901760
        %2665 = vmatprep.subr.mxu0 %v2664
        %v2666 = vand.u32 %v354, 4294901760
        %v2667 = vsub.f32 %v354, %v2666
        %v2668 = vand.u32 %v2667, 4294901760
        %2669 = vmatpush1.msra.mxu0 %v2668
        %v2670 = vand.u32 %v357, 4294901760
        %v2671 = vsub.f32 %v357, %v2670
        %v2672 = vand.u32 %v2671, 4294901760
        %2673 = vmatprep.subr.mxu0 %v2672
        %v2674 = vand.u32 %v356, 4294901760
        %v2675 = vsub.f32 %v356, %v2674
        %v2676 = vand.u32 %v2675, 4294901760
        %2677 = vmatpush1.msra.mxu0 %v2676
        %v2678 = vand.u32 %v359, 4294901760
        %v2679 = vsub.f32 %v359, %v2678
        %v2680 = vand.u32 %v2679, 4294901760
        %2681 = vmatprep.subr.mxu0 %v2680
        %v2682 = vand.u32 %v358, 4294901760
        %v2683 = vsub.f32 %v358, %v2682
        %v2684 = vand.u32 %v2683, 4294901760
        %2685 = vmatpush1.msra.mxu0 %v2684
        %v2686 = vand.u32 %v361, 4294901760
        %v2687 = vsub.f32 %v361, %v2686
        %v2688 = vand.u32 %v2687, 4294901760
        %2689 = vmatprep.subr.mxu0 %v2688
        %v2690 = vand.u32 %v360, 4294901760
        %v2691 = vsub.f32 %v360, %v2690
        %v2692 = vand.u32 %v2691, 4294901760
        %2693 = vmatpush1.msra.mxu0 %v2692
        %v2694 = vand.u32 %v363, 4294901760
        %v2695 = vsub.f32 %v363, %v2694
        %v2696 = vand.u32 %v2695, 4294901760
        %2697 = vmatprep.subr.mxu0 %v2696
        %v2698 = vand.u32 %v362, 4294901760
        %v2699 = vsub.f32 %v362, %v2698
        %v2700 = vand.u32 %v2699, 4294901760
        %2701 = vmatpush1.msra.mxu0 %v2700
        %v2702 = vand.u32 %v365, 4294901760
        %v2703 = vsub.f32 %v365, %v2702
        %v2704 = vand.u32 %v2703, 4294901760
        %2705 = vmatprep.subr.mxu0 %v2704
        %v2706 = vand.u32 %v364, 4294901760
        %v2707 = vsub.f32 %v364, %v2706
        %v2708 = vand.u32 %v2707, 4294901760
        %2709 = vmatpush1.msra.mxu0 %v2708
        %v2710 = vand.u32 %v367, 4294901760
        %v2711 = vsub.f32 %v367, %v2710
        %v2712 = vand.u32 %v2711, 4294901760
        %2713 = vmatprep.subr.mxu0 %v2712
        %v2714 = vand.u32 %v366, 4294901760
        %v2715 = vsub.f32 %v366, %v2714
        %v2716 = vand.u32 %v2715, 4294901760
        %2717 = vmatpush1.msra.mxu0 %v2716
        %v2718 = vand.u32 %v369, 4294901760
        %v2719 = vsub.f32 %v369, %v2718
        %v2720 = vand.u32 %v2719, 4294901760
        %2721 = vmatprep.subr.mxu0 %v2720
        %v2722 = vand.u32 %v368, 4294901760
        %v2723 = vsub.f32 %v368, %v2722
        %v2724 = vand.u32 %v2723, 4294901760
        %2725 = vmatpush1.msra.mxu0 %v2724
        %v2726 = vand.u32 %v371, 4294901760
        %v2727 = vsub.f32 %v371, %v2726
        %v2728 = vand.u32 %v2727, 4294901760
        %2729 = vmatprep.subr.mxu0 %v2728
        %v2730 = vand.u32 %v370, 4294901760
        %v2731 = vsub.f32 %v370, %v2730
        %v2732 = vand.u32 %v2731, 4294901760
        %2733 = vmatpush1.msra.mxu0 %v2732
        %v2734 = vand.u32 %v373, 4294901760
        %v2735 = vsub.f32 %v373, %v2734
        %v2736 = vand.u32 %v2735, 4294901760
        %2737 = vmatprep.subr.mxu0 %v2736
        %v2738 = vand.u32 %v372, 4294901760
        %v2739 = vsub.f32 %v372, %v2738
        %v2740 = vand.u32 %v2739, 4294901760
        %2741 = vmatpush1.msra.mxu0 %v2740
        %v2742 = vand.u32 %v375, 4294901760
        %v2743 = vsub.f32 %v375, %v2742
        %v2744 = vand.u32 %v2743, 4294901760
        %2745 = vmatprep.subr.mxu0 %v2744
        %v2746 = vand.u32 %v374, 4294901760
        %v2747 = vsub.f32 %v374, %v2746
        %v2748 = vand.u32 %v2747, 4294901760
        %2749 = vmatpush1.msra.mxu0 %v2748
        %v2750 = vand.u32 %v377, 4294901760
        %v2751 = vsub.f32 %v377, %v2750
        %v2752 = vand.u32 %v2751, 4294901760
        %2753 = vmatprep.subr.mxu0 %v2752
        %v2754 = vand.u32 %v376, 4294901760
        %v2755 = vsub.f32 %v376, %v2754
        %v2756 = vand.u32 %v2755, 4294901760
        %2757 = vmatpush1.msra.mxu0 %v2756
        %v2758 = vand.u32 %v379, 4294901760
        %v2759 = vsub.f32 %v379, %v2758
        %v2760 = vand.u32 %v2759, 4294901760
        %2761 = vmatprep.subr.mxu0 %v2760
        %v2762 = vand.u32 %v378, 4294901760
        %v2763 = vsub.f32 %v378, %v2762
        %v2764 = vand.u32 %v2763, 4294901760
        %2765 = vmatpush1.msra.mxu0 %v2764
        %v2766 = vand.u32 %v381, 4294901760
        %v2767 = vsub.f32 %v381, %v2766
        %v2768 = vand.u32 %v2767, 4294901760
        %2769 = vmatprep.subr.mxu0 %v2768
        %v2770 = vand.u32 %v380, 4294901760
        %v2771 = vsub.f32 %v380, %v2770
        %v2772 = vand.u32 %v2771, 4294901760
        %2773 = vmatpush1.msra.mxu0 %v2772
        %v2774 = vand.u32 %v383, 4294901760
        %v2775 = vsub.f32 %v383, %v2774
        %v2776 = vand.u32 %v2775, 4294901760
        %2777 = vmatprep.subr.mxu0 %v2776
        %v2778 = vand.u32 %v382, 4294901760
        %v2779 = vsub.f32 %v382, %v2778
        %v2780 = vand.u32 %v2779, 4294901760
        %2781 = vmatpush1.msra.mxu0 %v2780
        %v2782 = vand.u32 %v385, 4294901760
        %v2783 = vsub.f32 %v385, %v2782
        %v2784 = vand.u32 %v2783, 4294901760
        %2785 = vmatprep.subr.mxu0 %v2784
        %v2786 = vand.u32 %v384, 4294901760
        %v2787 = vsub.f32 %v384, %v2786
        %v2788 = vand.u32 %v2787, 4294901760
        %2789 = vmatpush1.msra.mxu0 %v2788
        %v2790 = vand.u32 %v387, 4294901760
        %v2791 = vsub.f32 %v387, %v2790
        %v2792 = vand.u32 %v2791, 4294901760
        %2793 = vmatprep.subr.mxu0 %v2792
        %v2794 = vand.u32 %v386, 4294901760
        %v2795 = vsub.f32 %v386, %v2794
        %v2796 = vand.u32 %v2795, 4294901760
        %2797 = vmatpush1.msra.mxu0 %v2796
        %v2798 = vand.u32 %v389, 4294901760
        %v2799 = vsub.f32 %v389, %v2798
        %v2800 = vand.u32 %v2799, 4294901760
        %2801 = vmatprep.subr.mxu0 %v2800
        %v2802 = vand.u32 %v388, 4294901760
        %v2803 = vsub.f32 %v388, %v2802
        %v2804 = vand.u32 %v2803, 4294901760
        %2805 = vmatpush1.msra.mxu0 %v2804
        %v2806 = vand.u32 %v391, 4294901760
        %v2807 = vsub.f32 %v391, %v2806
        %v2808 = vand.u32 %v2807, 4294901760
        %2809 = vmatprep.subr.mxu0 %v2808
        %v2810 = vand.u32 %v390, 4294901760
        %v2811 = vsub.f32 %v390, %v2810
        %v2812 = vand.u32 %v2811, 4294901760
        %2813 = vmatpush1.msra.mxu0 %v2812
        %v2814 = vand.u32 %v393, 4294901760
        %v2815 = vsub.f32 %v393, %v2814
        %v2816 = vand.u32 %v2815, 4294901760
        %2817 = vmatprep.subr.mxu0 %v2816
        %v2818 = vand.u32 %v392, 4294901760
        %v2819 = vsub.f32 %v392, %v2818
        %v2820 = vand.u32 %v2819, 4294901760
        %2821 = vmatpush1.msra.mxu0 %v2820
        %v2822 = vand.u32 %v395, 4294901760
        %v2823 = vsub.f32 %v395, %v2822
        %v2824 = vand.u32 %v2823, 4294901760
        %2825 = vmatprep.subr.mxu0 %v2824
        %v2826 = vand.u32 %v394, 4294901760
        %v2827 = vsub.f32 %v394, %v2826
        %v2828 = vand.u32 %v2827, 4294901760
        %2829 = vmatpush1.msra.mxu0 %v2828
        %v2830 = vand.u32 %v267, 4294901760
        %2831 = vmatprep.mubr.f32.mxu0 %v2830
        %v2832 = vand.u32 %v266, 4294901760
        %2833 = vmatmul.mubr.f32.gmra.mrb[0].mxu0 %v2832
        %v2834 = vpop.f32.mrb[0].mxu0
        %v2835 = vadd.f32 %v2570, %v2834
        %v2836 = vpop.f32.mrb[0].mxu0
        %v2837 = vadd.f32 %v2572, %v2836
        %2838 = vdwg.mxu0
        %v2839 = vand.u32 %v333, 4294901760
        %2840 = vmatprep.subr.mxu0 %v2839
        %v2841 = vand.u32 %v332, 4294901760
        %2842 = vmatpush1.msra.mxu0 %v2841
        %v2843 = vand.u32 %v335, 4294901760
        %2844 = vmatprep.subr.mxu0 %v2843
        %v2845 = vand.u32 %v334, 4294901760
        %2846 = vmatpush1.msra.mxu0 %v2845
        %v2847 = vand.u32 %v337, 4294901760
        %2848 = vmatprep.subr.mxu0 %v2847
        %v2849 = vand.u32 %v336, 4294901760
        %2850 = vmatpush1.msra.mxu0 %v2849
        %v2851 = vand.u32 %v339, 4294901760
        %2852 = vmatprep.subr.mxu0 %v2851
        %v2853 = vand.u32 %v338, 4294901760
        %2854 = vmatpush1.msra.mxu0 %v2853
        %v2855 = vand.u32 %v341, 4294901760
        %2856 = vmatprep.subr.mxu0 %v2855
        %v2857 = vand.u32 %v340, 4294901760
        %2858 = vmatpush1.msra.mxu0 %v2857
        %v2859 = vand.u32 %v343, 4294901760
        %2860 = vmatprep.subr.mxu0 %v2859
        %v2861 = vand.u32 %v342, 4294901760
        %2862 = vmatpush1.msra.mxu0 %v2861
        %v2863 = vand.u32 %v345, 4294901760
        %2864 = vmatprep.subr.mxu0 %v2863
        %v2865 = vand.u32 %v344, 4294901760
        %2866 = vmatpush1.msra.mxu0 %v2865
        %v2867 = vand.u32 %v347, 4294901760
        %2868 = vmatprep.subr.mxu0 %v2867
        %v2869 = vand.u32 %v346, 4294901760
        %2870 = vmatpush1.msra.mxu0 %v2869
        %v2871 = vand.u32 %v349, 4294901760
        %2872 = vmatprep.subr.mxu0 %v2871
        %v2873 = vand.u32 %v348, 4294901760
        %2874 = vmatpush1.msra.mxu0 %v2873
        %v2875 = vand.u32 %v351, 4294901760
        %2876 = vmatprep.subr.mxu0 %v2875
        %v2877 = vand.u32 %v350, 4294901760
        %2878 = vmatpush1.msra.mxu0 %v2877
        %v2879 = vand.u32 %v353, 4294901760
        %2880 = vmatprep.subr.mxu0 %v2879
        %v2881 = vand.u32 %v352, 4294901760
        %2882 = vmatpush1.msra.mxu0 %v2881
        %v2883 = vand.u32 %v355, 4294901760
        %2884 = vmatprep.subr.mxu0 %v2883
        %v2885 = vand.u32 %v354, 4294901760
        %2886 = vmatpush1.msra.mxu0 %v2885
        %v2887 = vand.u32 %v357, 4294901760
        %2888 = vmatprep.subr.mxu0 %v2887
        %v2889 = vand.u32 %v356, 4294901760
        %2890 = vmatpush1.msra.mxu0 %v2889
        %v2891 = vand.u32 %v359, 4294901760
        %2892 = vmatprep.subr.mxu0 %v2891
        %v2893 = vand.u32 %v358, 4294901760
        %2894 = vmatpush1.msra.mxu0 %v2893
        %v2895 = vand.u32 %v361, 4294901760
        %2896 = vmatprep.subr.mxu0 %v2895
        %v2897 = vand.u32 %v360, 4294901760
        %2898 = vmatpush1.msra.mxu0 %v2897
        %v2899 = vand.u32 %v363, 4294901760
        %2900 = vmatprep.subr.mxu0 %v2899
        %v2901 = vand.u32 %v362, 4294901760
        %2902 = vmatpush1.msra.mxu0 %v2901
        %v2903 = vand.u32 %v365, 4294901760
        %2904 = vmatprep.subr.mxu0 %v2903
        %v2905 = vand.u32 %v364, 4294901760
        %2906 = vmatpush1.msra.mxu0 %v2905
        %v2907 = vand.u32 %v367, 4294901760
        %2908 = vmatprep.subr.mxu0 %v2907
        %v2909 = vand.u32 %v366, 4294901760
        %2910 = vmatpush1.msra.mxu0 %v2909
        %v2911 = vand.u32 %v369, 4294901760
        %2912 = vmatprep.subr.mxu0 %v2911
        %v2913 = vand.u32 %v368, 4294901760
        %2914 = vmatpush1.msra.mxu0 %v2913
        %v2915 = vand.u32 %v371, 4294901760
        %2916 = vmatprep.subr.mxu0 %v2915
        %v2917 = vand.u32 %v370, 4294901760
        %2918 = vmatpush1.msra.mxu0 %v2917
        %v2919 = vand.u32 %v373, 4294901760
        %2920 = vmatprep.subr.mxu0 %v2919
        %v2921 = vand.u32 %v372, 4294901760
        %2922 = vmatpush1.msra.mxu0 %v2921
        %v2923 = vand.u32 %v375, 4294901760
        %2924 = vmatprep.subr.mxu0 %v2923
        %v2925 = vand.u32 %v374, 4294901760
        %2926 = vmatpush1.msra.mxu0 %v2925
        %v2927 = vand.u32 %v377, 4294901760
        %2928 = vmatprep.subr.mxu0 %v2927
        %v2929 = vand.u32 %v376, 4294901760
        %2930 = vmatpush1.msra.mxu0 %v2929
        %v2931 = vand.u32 %v379, 4294901760
        %2932 = vmatprep.subr.mxu0 %v2931
        %v2933 = vand.u32 %v378, 4294901760
        %2934 = vmatpush1.msra.mxu0 %v2933
        %v2935 = vand.u32 %v381, 4294901760
        %2936 = vmatprep.subr.mxu0 %v2935
        %v2937 = vand.u32 %v380, 4294901760
        %2938 = vmatpush1.msra.mxu0 %v2937
        %v2939 = vand.u32 %v383, 4294901760
        %2940 = vmatprep.subr.mxu0 %v2939
        %v2941 = vand.u32 %v382, 4294901760
        %2942 = vmatpush1.msra.mxu0 %v2941
        %v2943 = vand.u32 %v385, 4294901760
        %2944 = vmatprep.subr.mxu0 %v2943
        %v2945 = vand.u32 %v384, 4294901760
        %2946 = vmatpush1.msra.mxu0 %v2945
        %v2947 = vand.u32 %v387, 4294901760
        %2948 = vmatprep.subr.mxu0 %v2947
        %v2949 = vand.u32 %v386, 4294901760
        %2950 = vmatpush1.msra.mxu0 %v2949
        %v2951 = vand.u32 %v389, 4294901760
        %2952 = vmatprep.subr.mxu0 %v2951
        %v2953 = vand.u32 %v388, 4294901760
        %2954 = vmatpush1.msra.mxu0 %v2953
        %v2955 = vand.u32 %v391, 4294901760
        %2956 = vmatprep.subr.mxu0 %v2955
        %v2957 = vand.u32 %v390, 4294901760
        %2958 = vmatpush1.msra.mxu0 %v2957
        %v2959 = vand.u32 %v393, 4294901760
        %2960 = vmatprep.subr.mxu0 %v2959
        %v2961 = vand.u32 %v392, 4294901760
        %2962 = vmatpush1.msra.mxu0 %v2961
        %v2963 = vand.u32 %v395, 4294901760
        %2964 = vmatprep.subr.mxu0 %v2963
        %v2965 = vand.u32 %v394, 4294901760
        %2966 = vmatpush1.msra.mxu0 %v2965
        %v2967 = vand.u32 %v267, 4294901760
        %2968 = vmatprep.mubr.f32.mxu0 %v2967
        %v2969 = vand.u32 %v266, 4294901760
        %2970 = vmatmul.mubr.f32.gmra.mrb[0].mxu0 %v2969
        %v2971 = vpop.f32.mrb[0].mxu0
        %v2972 = vadd.f32 %v2835, %v2971
        %v2973 = vpop.f32.mrb[0].mxu0
        %v2974 = vadd.f32 %v2837, %v2973
        %2975 = vdwg.mxu0
        %v2976 = vld [vmem:[%s234] sm:$0xff]
        %v2977 = vld [vmem:[%s234 + $0x8] sm:$0xff]
        %v2978 = vadd.f32 %v2972, %v2976
        %v2979 = vadd.f32 %v2974, %v2977
        %v2980 = vmax.f32 %v2978, 0.0
        %v2981 = vmax.f32 %v2979, 0.0
        %2982 = vst [vmem:[%s263] sm:$0xff] %v2980
        %2983 = vst [vmem:[%s263 + $0x8] sm:$0xff] %v2981
        %s2984 = sand.u32 %s124, 1
        %s2985 = scalar_lea.sflag [#allocation4], %s2984
        %s2986 = sand.u32 %s124, 1
        %s2987 = smul.addr %s2986, 16
        %s2988 = scalar_lea.vmem [#allocation8], %s2987
        // Predicated region
        $region49: #{tpu_custom_call.1} parent=35 // pred_check
          %p2989 = pneg %p134
        $region50: #{tpu_custom_call.1} parent=35 // pred_check_branch
          %2991 = sbr.rel (%p2989) target = $region52
        $region51: #{tpu_custom_call.1} parent=35 // pred_region
          %s2993 = ssub.s32 256, 256
          %2994 = vsyncadd %s2985, %s2993
          %s2995 = smul.addr %s22, 2
          %s2996 = smul.addr %s2995, 128
          %s2997 = scalar_lea.hbm %s4, %s2996
          %s2999 = sshll.u32 %s2988, 4
          %s3000 = int_to_ptr.vmem [resolvable:$true] %s2999
          %3002 = dma.vmem_to_hbm [thread:$0]  %s3000, 256, %s2997, %s2985
        $region52: #{tpu_custom_call.1} parent=35 // pred_fallthru
          _
      $region36: #{tpu_custom_call.1} parent=5 // pred_fallthru
        _
      %p3003 = scmp.le.s32.totalorder 2, %s17
      // Predicated region
      $region53: #{tpu_custom_call.1} parent=5 // pred_check
        %p3004 = pneg %p3003
      $region54: #{tpu_custom_call.1} parent=5 // pred_check_branch
        %3006 = sbr.rel (%p3004) target = $region56
      $region55: #{tpu_custom_call.1} parent=5 // pred_region
        %s3007 = ssub.s32 %s17, 2
        // Predicated region
        $region57: #{tpu_custom_call.1} parent=55 // pred_check
          %p3008 = pneg %p140
        $region58: #{tpu_custom_call.1} parent=55 // pred_check_branch
          %3010 = sbr.rel (%p3008) target = $region60
        $region59: #{tpu_custom_call.1} parent=55 // pred_region
          %s3011 = sand.u32 %s125, 1
          %s3012 = scalar_lea.sflag [#allocation4], %s3011
          %s3013 = sand.u32 %s125, 1
          %s3014 = smul.addr %s3013, 16
          %s3015 = scalar_lea.vmem [#allocation8], %s3014
          %3016 = dma.done %s3012, 256
        $region60: #{tpu_custom_call.1} parent=55 // pred_fallthru
          _
      $region56: #{tpu_custom_call.1} parent=5 // pred_fallthru
        _
    $region6: #{tpu_custom_call.1} parent=1 // loop_footer
      %s21 = sadd.s32 1, %s17
    $region7: #{tpu_custom_call.1} parent=1 // loop_footer_branch
      %16 = sbr.rel target = $region3
    $region8: #{tpu_custom_call.1} parent=1 // loop_exit
      _
    %3017 = vsyncpa [#allocation3], 1
    %s3018 = scalar_lea.sflag [#allocation3], 1
    %3019 = vsyncpa %s3018, 1
    %3020 = vsyncpa [#allocation6], 1
    %3021 = vsyncpa [#allocation4], 1
    %s3022 = scalar_lea.sflag [#allocation4], 1
    %3023 = vsyncpa %s3022, 1

</llo_original>
